<compile_context>
chip_gen: v7x
topology: tpu7x:2x2x1
jax: 0.10.0
libtpu: 0.0.40
codegen_flags: <defaults>
</compile_context>

<pallas_src>
import jax
import jax.numpy as jnp
from jax.experimental import pallas as pl
from jax.experimental.pallas import tpu as pltpu


# ---- model dimensions (synthetic config) ------------------------------------
B = 2          # batch (number of sequences)
T = 8          # sequence length
OBS = 32       # flattened observation dim
HIDDEN = 32    # config.HIDDEN
# logit heads, concatenated in sorted(atnKey) / sorted(argKey) order:
#   attack.style (3), attack.target (8), move.direction (4)
LOGIT_SIZES = (3, 8, 4)
NUM_LOGITS = sum(LOGIT_SIZES)   # 15
HEAD = NUM_LOGITS + 1           # fused [logits | value] head width = 16

assert OBS == HIDDEN  # weight-slab packing relies on a shared contraction row dim

# ---- packed-operand layout (128-lane aligned sections) -----------------------
W_IN_OFF, WX_OFF, WH_OFF, WHEAD_OFF = 0, 128, 256, 384
W_SLAB_COLS = 512
B_IN_OFF, B_LSTM_OFF, B_HEAD_OFF = 0, 128, 256
B_SLAB_COLS = 384


def pack_params(params):
    """One-time packing of all weights/biases into two lane-aligned slabs."""
    H = HIDDEN
    w_head = jnp.concatenate([params["wl"], params["wv"]], axis=1)   # (H, 16)
    b_head = jnp.concatenate([params["bl"], params["bv"]], axis=1)   # (1, 16)

    w_slab = jnp.zeros((H, W_SLAB_COLS), jnp.float32)
    w_slab = w_slab.at[:, W_IN_OFF:W_IN_OFF + H].set(params["w_in"])
    w_slab = w_slab.at[:, WX_OFF:WX_OFF + 4 * H].set(params["wx"])
    w_slab = w_slab.at[:, WH_OFF:WH_OFF + 4 * H].set(params["wh"])
    w_slab = w_slab.at[:, WHEAD_OFF:WHEAD_OFF + HEAD].set(w_head)

    b_slab = jnp.zeros((1, B_SLAB_COLS), jnp.float32)
    b_slab = b_slab.at[:, B_IN_OFF:B_IN_OFF + H].set(params["b_in"])
    b_slab = b_slab.at[:, B_LSTM_OFF:B_LSTM_OFF + 4 * H].set(params["b_lstm"])
    b_slab = b_slab.at[:, B_HEAD_OFF:B_HEAD_OFF + HEAD].set(b_head)
    return {"w_slab": w_slab, "b_slab": b_slab}


def _lstm_policy_kernel(obs_ref, hc0_ref, w_ref, b_ref,
                        out_ref, hc_out_ref,
                        gx_sc, h_all_sc):
    """Whole recurrent forward in one gridless invocation; time loop unrolled."""
    H = HIDDEN

    # ---- unpack operand slabs (tile-aligned static slices, once) ----------------
    w_in = w_ref[:, W_IN_OFF:W_IN_OFF + H]              # (OBS, H)
    wx = w_ref[:, WX_OFF:WX_OFF + 4 * H]                # (H, 4H)
    wh = w_ref[:, WH_OFF:WH_OFF + 4 * H]                # (H, 4H)  hoisted once
    w_hd = w_ref[:, WHEAD_OFF:WHEAD_OFF + HEAD]         # (H, 16)
    b_in = b_ref[:, B_IN_OFF:B_IN_OFF + H]              # (1, H)
    b_lstm = b_ref[:, B_LSTM_OFF:B_LSTM_OFF + 4 * H]    # (1, 4H)
    b_hd = b_ref[:, B_HEAD_OFF:B_HEAD_OFF + HEAD]       # (1, 16)

    # ---- hoisted input path: batched over all T*B rows (off the serial path) ----
    x = obs_ref[...]                                     # (B*T, OBS), batch-major flat
    z = jnp.maximum(
        jnp.dot(x, w_in, preferred_element_type=jnp.float32) + b_in, 0.0)
    gx = jnp.dot(z, wx, preferred_element_type=jnp.float32) + b_lstm   # (B*T, 4H)
    # Time-major scratch so the loop reads gx_sc[t]: address offset + vld, no
    # per-step sublane gather on the recurrence critical path.
    gx_sc[...] = jnp.swapaxes(gx.reshape(B, T, 4 * H), 0, 1)           # (T, B, 4H)

    # ---- serial recurrence: only h @ Wh + elementwise gate math per step --------
    h = hc0_ref[:, 0:H].astype(jnp.float32)
    c = hc0_ref[:, H:2 * H].astype(jnp.float32)
    for t in range(T):                                   # static unroll
        gates = gx_sc[t] + jnp.dot(h, wh, preferred_element_type=jnp.float32)
        sg = jax.nn.sigmoid(gates)                       # full 128-lane vreg
        tg = jnp.tanh(gates)
        i_g = sg[:, 0 * H:1 * H]
        f_g = sg[:, 1 * H:2 * H]
        g_g = tg[:, 2 * H:3 * H]
        o_g = sg[:, 3 * H:4 * H]
        c = f_g * c + i_g * g_g
        h = o_g * jnp.tanh(c)
        h_all_sc[t] = h                                  # one store into one tile

    # ---- fused value+logit head over all T*B hidden states ----------------------
    # Restore RLlib's b*T + t row order once, off the critical path.
    h_all = jnp.swapaxes(h_all_sc[...], 0, 1).reshape(B * T, H)
    out_ref[...] = (jnp.dot(h_all, w_hd, preferred_element_type=jnp.float32)
                    + b_hd).astype(out_ref.dtype)        # (B*T, 16)

    # ---- packed recurrent state output, written once -----------------------------
    hc_out_ref[...] = jnp.concatenate([h, c], axis=1).astype(hc_out_ref.dtype)


@jax.jit
def rllib_policy_forward(obs_btd, state, packed, seq_lens):
    """RLlibPolicy.forward.

    obs_btd : (B, T, OBS)  -- input_dict['obs'] after add_time_dimension
    state   : [h, c] each (B, HIDDEN)
    packed  : dict from pack_params (one-time packed weight/bias slabs)
    returns : (logits (B*T, NUM_LOGITS), [h, c]), value (B*T,)
    """
    del seq_lens  # TODO(synk): RLlib sequence-length masking not applied in-kernel.
    h0, c0 = state
    obs_flat = obs_btd.reshape(B * T, OBS)               # contiguous; flat order b*T+t
    hc0 = jnp.concatenate([h0, c0], axis=1)              # (B, 2H) -> one input DMA

    out, hc_out = pl.pallas_call(
        _lstm_policy_kernel,
        out_shape=(
            jax.ShapeDtypeStruct((B * T, HEAD), jnp.float32),
            jax.ShapeDtypeStruct((B, 2 * HIDDEN), jnp.float32),
        ),
        scratch_shapes=[
            pltpu.VMEM((T, B, 4 * HIDDEN), jnp.float32),  # time-major gx precompute
            pltpu.VMEM((T, B, HIDDEN), jnp.float32),      # time-major hidden stash
        ],
    )(obs_flat, hc0, packed["w_slab"], packed["b_slab"])

    logits = out[:, :NUM_LOGITS]                          # (B*T, 15), order b*T + t
    value = out[:, NUM_LOGITS]                            # (B*T,)
    new_state = [hc_out[:, :HIDDEN], hc_out[:, HIDDEN:]]
    return logits, new_state, value


def _reference_forward(obs_btd, state, params):
    """Pure-JAX reference of the same math (for a sanity check)."""
    h, c = state
    logits_out, value_out = [], []
    for t in range(T):
        x = obs_btd[:, t, :]
        z = jnp.maximum(x @ params["w_in"] + params["b_in"], 0.0)
        gates = z @ params["wx"] + h @ params["wh"] + params["b_lstm"]
        H = HIDDEN
        i_g = jax.nn.sigmoid(gates[:, 0 * H:1 * H])
        f_g = jax.nn.sigmoid(gates[:, 1 * H:2 * H])
        g_g = jnp.tanh(gates[:, 2 * H:3 * H])
        o_g = jax.nn.sigmoid(gates[:, 3 * H:4 * H])
        c = f_g * c + i_g * g_g
        h = o_g * jnp.tanh(c)
        value_out.append(h @ params["wv"] + params["bv"])
        logits_out.append(h @ params["wl"] + params["bl"])
    logits = jnp.stack(logits_out, axis=1).reshape(B * T, NUM_LOGITS)
    value = jnp.stack(value_out, axis=1).reshape(B * T)
    return logits, [h, c], value


def _init_params(key):
    ks = jax.random.split(key, 8)
    s = 0.1
    return {
        "w_in": s * jax.random.normal(ks[0], (OBS, HIDDEN), jnp.float32),
        "b_in": s * jax.random.normal(ks[1], (1, HIDDEN), jnp.float32),
        "wx": s * jax.random.normal(ks[2], (HIDDEN, 4 * HIDDEN), jnp.float32),
        "wh": s * jax.random.normal(ks[3], (HIDDEN, 4 * HIDDEN), jnp.float32),
        "b_lstm": s * jax.random.normal(ks[4], (1, 4 * HIDDEN), jnp.float32),
        "wv": s * jax.random.normal(ks[5], (HIDDEN, 1), jnp.float32),
        "bv": jnp.zeros((1, 1), jnp.float32),
        "wl": s * jax.random.normal(ks[6], (HIDDEN, NUM_LOGITS), jnp.float32),
        "bl": s * jax.random.normal(ks[7], (1, NUM_LOGITS), jnp.float32),
    }


if __name__ == "__main__":
    key = jax.random.PRNGKey(0)
    k_obs, k_param = jax.random.split(key)

    obs = jax.random.normal(k_obs, (B, T, OBS), jnp.float32)
    # get_initial_state(): zero hidden / cell states of size HIDDEN
    state = [jnp.zeros((B, HIDDEN), jnp.float32), jnp.zeros((B, HIDDEN), jnp.float32)]
    seq_lens = jnp.full((B,), T, jnp.int32)
    params = _init_params(k_param)
    packed = jax.block_until_ready(pack_params(params))   # one-time packing, outside jit

    logits, new_state, value = rllib_policy_forward(obs, state, packed, seq_lens)
    jax.block_until_ready((logits, new_state, value))

    ref_logits, ref_state, ref_value = _reference_forward(obs, state, params)
    assert logits.shape == (B * T, NUM_LOGITS)
    assert value.shape == (B * T,)
    assert jnp.allclose(logits, ref_logits, rtol=1e-4, atol=1e-4)
    assert jnp.allclose(value, ref_value, rtol=1e-4, atol=1e-4)
    assert jnp.allclose(new_state[0], ref_state[0], rtol=1e-4, atol=1e-4)
    assert jnp.allclose(new_state[1], ref_state[1], rtol=1e-4, atol=1e-4)

    print("KERNEL_OK")
</pallas_src>

<mosaic_0001>
module attributes {stable_mosaic.version = 11 : i64} {
  func.func @_lstm_policy_kernel(%arg0: memref<16x32xf32, #tpu.memory_space<vmem>>, %arg1: memref<2x64xf32, #tpu.memory_space<vmem>>, %arg2: memref<32x512xf32, #tpu.memory_space<vmem>>, %arg3: memref<1x384xf32, #tpu.memory_space<vmem>>, %arg4: memref<16x16xf32, #tpu.memory_space<vmem>>, %arg5: memref<2x64xf32, #tpu.memory_space<vmem>>, %arg6: memref<8x2x128xf32, #tpu.memory_space<vmem>>, %arg7: memref<8x2x32xf32, #tpu.memory_space<vmem>>) attributes {dimension_semantics = [], scalar_prefetch = 0 : i64, scratch_operands = 2 : i64, tpu.core_type = #tpu.core_type<tc>} {
    %c0 = arith.constant 0 : index
    %c0_0 = arith.constant 0 : index
    %0 = vector.load %arg2[%c0, %c0_0] : memref<32x512xf32, #tpu.memory_space<vmem>>, vector<32x32xf32>
    %c0_1 = arith.constant 0 : index
    %c128 = arith.constant 128 : index
    %1 = vector.load %arg2[%c0_1, %c128] : memref<32x512xf32, #tpu.memory_space<vmem>>, vector<32x128xf32>
    %c0_2 = arith.constant 0 : index
    %c256 = arith.constant 256 : index
    %2 = vector.load %arg2[%c0_2, %c256] : memref<32x512xf32, #tpu.memory_space<vmem>>, vector<32x128xf32>
    %c0_3 = arith.constant 0 : index
    %c384 = arith.constant 384 : index
    %3 = vector.load %arg2[%c0_3, %c384] : memref<32x512xf32, #tpu.memory_space<vmem>>, vector<32x16xf32>
    %c0_4 = arith.constant 0 : index
    %c0_5 = arith.constant 0 : index
    %4 = vector.load %arg3[%c0_4, %c0_5] : memref<1x384xf32, #tpu.memory_space<vmem>>, vector<1x32xf32>
    %c0_6 = arith.constant 0 : index
    %c128_7 = arith.constant 128 : index
    %5 = vector.load %arg3[%c0_6, %c128_7] : memref<1x384xf32, #tpu.memory_space<vmem>>, vector<1x128xf32>
    %c0_8 = arith.constant 0 : index
    %c256_9 = arith.constant 256 : index
    %6 = vector.load %arg3[%c0_8, %c256_9] : memref<1x384xf32, #tpu.memory_space<vmem>>, vector<1x16xf32>
    %c0_10 = arith.constant 0 : index
    %c0_11 = arith.constant 0 : index
    %7 = vector.load %arg0[%c0_10, %c0_11] : memref<16x32xf32, #tpu.memory_space<vmem>>, vector<16x32xf32>
    %cst = arith.constant dense<0.000000e+00> : vector<16x32xf32>
    %8 = tpu.matmul %7, %0, %cst {dimension_numbers = #tpu.dot_dimension_numbers<[1], [0], [0], [1], [0, 0, 1, 1], [], []>} : vector<16x32xf32>, vector<32x32xf32>, vector<16x32xf32> -> vector<16x32xf32>
    %9 = vector.broadcast %4 : vector<1x32xf32> to vector<16x32xf32>
    %10 = arith.addf %8, %9 : vector<16x32xf32>
    %cst_12 = arith.constant 0.000000e+00 : f32
    %11 = vector.broadcast %cst_12 : f32 to vector<16x32xf32>
    %12 = arith.maximumf %10, %11 : vector<16x32xf32>
    %cst_13 = arith.constant dense<0.000000e+00> : vector<16x128xf32>
    %13 = tpu.matmul %12, %1, %cst_13 {dimension_numbers = #tpu.dot_dimension_numbers<[1], [0], [0], [1], [0, 0, 1, 1], [], []>} : vector<16x32xf32>, vector<32x128xf32>, vector<16x128xf32> -> vector<16x128xf32>
    %14 = vector.broadcast %5 : vector<1x128xf32> to vector<16x128xf32>
    %15 = arith.addf %13, %14 : vector<16x128xf32>
    %16 = vector.shape_cast %15 : vector<16x128xf32> to vector<2x8x128xf32>
    %17 = tpu.transpose %16, [1, 0, 2] : vector<2x8x128xf32> -> vector<8x2x128xf32>
    %c0_14 = arith.constant 0 : index
    %c0_15 = arith.constant 0 : index
    %c0_16 = arith.constant 0 : index
    %18 = vector.load %arg6[%c0_14, %c0_15, %c0_16] : memref<8x2x128xf32, #tpu.memory_space<vmem>>, vector<8x2x128xf32>
    tpu.vector_store %arg6[%c0_14, %c0_15, %c0_16], %17 {strides = array<i32>} : memref<8x2x128xf32, #tpu.memory_space<vmem>>, vector<8x2x128xf32>,
    %c0_17 = arith.constant 0 : index
    %c0_18 = arith.constant 0 : index
    %19 = vector.load %arg1[%c0_17, %c0_18] : memref<2x64xf32, #tpu.memory_space<vmem>>, vector<2x32xf32>
    %c0_19 = arith.constant 0 : index
    %c32 = arith.constant 32 : index
    %20 = vector.load %arg1[%c0_19, %c32] : memref<2x64xf32, #tpu.memory_space<vmem>>, vector<2x32xf32>
    %c0_20 = arith.constant 0 : index
    %c0_21 = arith.constant 0 : index
    %c0_22 = arith.constant 0 : index
    %21 = vector.load %arg6[%c0_20, %c0_21, %c0_22] : memref<8x2x128xf32, #tpu.memory_space<vmem>>, vector<1x2x128xf32>
    %22 = vector.shape_cast %21 : vector<1x2x128xf32> to vector<2x128xf32>
    %cst_23 = arith.constant dense<0.000000e+00> : vector<2x128xf32>
    %23 = tpu.matmul %19, %2, %cst_23 {dimension_numbers = #tpu.dot_dimension_numbers<[1], [0], [0], [1], [0, 0, 1, 1], [], []>} : vector<2x32xf32>, vector<32x128xf32>, vector<2x128xf32> -> vector<2x128xf32>
    %24 = arith.addf %22, %23 : vector<2x128xf32>
    %25 = arith.negf %24 : vector<2x128xf32>
    %26 = math.exp %25 : vector<2x128xf32>
    %cst_24 = arith.constant 1.000000e+00 : f32
    %27 = vector.broadcast %cst_24 : f32 to vector<2x128xf32>
    %28 = arith.addf %27, %26 : vector<2x128xf32>
    %29 = arith.divf %27, %28 : vector<2x128xf32>
    %30 = math.tanh %24 : vector<2x128xf32>
    %31 = vector.extract_strided_slice %29 {offsets = [0, 0], sizes = [2, 32], strides = [1, 1]} : vector<2x128xf32> to vector<2x32xf32>
    %32 = vector.extract_strided_slice %29 {offsets = [0, 32], sizes = [2, 32], strides = [1, 1]} : vector<2x128xf32> to vector<2x32xf32>
    %33 = vector.extract_strided_slice %30 {offsets = [0, 64], sizes = [2, 32], strides = [1, 1]} : vector<2x128xf32> to vector<2x32xf32>
    %34 = vector.extract_strided_slice %29 {offsets = [0, 96], sizes = [2, 32], strides = [1, 1]} : vector<2x128xf32> to vector<2x32xf32>
    %35 = arith.mulf %32, %20 : vector<2x32xf32>
    %36 = arith.mulf %31, %33 : vector<2x32xf32>
    %37 = arith.addf %35, %36 : vector<2x32xf32>
    %38 = math.tanh %37 : vector<2x32xf32>
    %39 = arith.mulf %34, %38 : vector<2x32xf32>
    %c0_25 = arith.constant 0 : index
    %c0_26 = arith.constant 0 : index
    %c0_27 = arith.constant 0 : index
    %40 = vector.load %arg7[%c0_25, %c0_26, %c0_27] : memref<8x2x32xf32, #tpu.memory_space<vmem>>, vector<1x2x32xf32>
    %41 = vector.shape_cast %40 : vector<1x2x32xf32> to vector<2x32xf32>
    %42 = vector.shape_cast %39 : vector<2x32xf32> to vector<1x2x32xf32>
    tpu.vector_store %arg7[%c0_25, %c0_26, %c0_27], %42 {strides = array<i32>} : memref<8x2x32xf32, #tpu.memory_space<vmem>>, vector<1x2x32xf32>,
    %c1 = arith.constant 1 : index
    %c0_28 = arith.constant 0 : index
    %c0_29 = arith.constant 0 : index
    %43 = vector.load %arg6[%c1, %c0_28, %c0_29] : memref<8x2x128xf32, #tpu.memory_space<vmem>>, vector<1x2x128xf32>
    %44 = vector.shape_cast %43 : vector<1x2x128xf32> to vector<2x128xf32>
    %cst_30 = arith.constant dense<0.000000e+00> : vector<2x128xf32>
    %45 = tpu.matmul %39, %2, %cst_30 {dimension_numbers = #tpu.dot_dimension_numbers<[1], [0], [0], [1], [0, 0, 1, 1], [], []>} : vector<2x32xf32>, vector<32x128xf32>, vector<2x128xf32> -> vector<2x128xf32>
    %46 = arith.addf %44, %45 : vector<2x128xf32>
    %47 = arith.negf %46 : vector<2x128xf32>
    %48 = math.exp %47 : vector<2x128xf32>
    %cst_31 = arith.constant 1.000000e+00 : f32
    %49 = vector.broadcast %cst_31 : f32 to vector<2x128xf32>
    %50 = arith.addf %49, %48 : vector<2x128xf32>
    %51 = arith.divf %49, %50 : vector<2x128xf32>
    %52 = math.tanh %46 : vector<2x128xf32>
    %53 = vector.extract_strided_slice %51 {offsets = [0, 0], sizes = [2, 32], strides = [1, 1]} : vector<2x128xf32> to vector<2x32xf32>
    %54 = vector.extract_strided_slice %51 {offsets = [0, 32], sizes = [2, 32], strides = [1, 1]} : vector<2x128xf32> to vector<2x32xf32>
    %55 = vector.extract_strided_slice %52 {offsets = [0, 64], sizes = [2, 32], strides = [1, 1]} : vector<2x128xf32> to vector<2x32xf32>
    %56 = vector.extract_strided_slice %51 {offsets = [0, 96], sizes = [2, 32], strides = [1, 1]} : vector<2x128xf32> to vector<2x32xf32>
    %57 = arith.mulf %54, %37 : vector<2x32xf32>
    %58 = arith.mulf %53, %55 : vector<2x32xf32>
    %59 = arith.addf %57, %58 : vector<2x32xf32>
    %60 = math.tanh %59 : vector<2x32xf32>
    %61 = arith.mulf %56, %60 : vector<2x32xf32>
    %c1_32 = arith.constant 1 : index
    %c0_33 = arith.constant 0 : index
    %c0_34 = arith.constant 0 : index
    %62 = vector.load %arg7[%c1_32, %c0_33, %c0_34] : memref<8x2x32xf32, #tpu.memory_space<vmem>>, vector<1x2x32xf32>
    %63 = vector.shape_cast %62 : vector<1x2x32xf32> to vector<2x32xf32>
    %64 = vector.shape_cast %61 : vector<2x32xf32> to vector<1x2x32xf32>
    tpu.vector_store %arg7[%c1_32, %c0_33, %c0_34], %64 {strides = array<i32>} : memref<8x2x32xf32, #tpu.memory_space<vmem>>, vector<1x2x32xf32>,
    %c2 = arith.constant 2 : index
    %c0_35 = arith.constant 0 : index
    %c0_36 = arith.constant 0 : index
    %65 = vector.load %arg6[%c2, %c0_35, %c0_36] : memref<8x2x128xf32, #tpu.memory_space<vmem>>, vector<1x2x128xf32>
    %66 = vector.shape_cast %65 : vector<1x2x128xf32> to vector<2x128xf32>
    %cst_37 = arith.constant dense<0.000000e+00> : vector<2x128xf32>
    %67 = tpu.matmul %61, %2, %cst_37 {dimension_numbers = #tpu.dot_dimension_numbers<[1], [0], [0], [1], [0, 0, 1, 1], [], []>} : vector<2x32xf32>, vector<32x128xf32>, vector<2x128xf32> -> vector<2x128xf32>
    %68 = arith.addf %66, %67 : vector<2x128xf32>
    %69 = arith.negf %68 : vector<2x128xf32>
    %70 = math.exp %69 : vector<2x128xf32>
    %cst_38 = arith.constant 1.000000e+00 : f32
    %71 = vector.broadcast %cst_38 : f32 to vector<2x128xf32>
    %72 = arith.addf %71, %70 : vector<2x128xf32>
    %73 = arith.divf %71, %72 : vector<2x128xf32>
    %74 = math.tanh %68 : vector<2x128xf32>
    %75 = vector.extract_strided_slice %73 {offsets = [0, 0], sizes = [2, 32], strides = [1, 1]} : vector<2x128xf32> to vector<2x32xf32>
    %76 = vector.extract_strided_slice %73 {offsets = [0, 32], sizes = [2, 32], strides = [1, 1]} : vector<2x128xf32> to vector<2x32xf32>
    %77 = vector.extract_strided_slice %74 {offsets = [0, 64], sizes = [2, 32], strides = [1, 1]} : vector<2x128xf32> to vector<2x32xf32>
    %78 = vector.extract_strided_slice %73 {offsets = [0, 96], sizes = [2, 32], strides = [1, 1]} : vector<2x128xf32> to vector<2x32xf32>
    %79 = arith.mulf %76, %59 : vector<2x32xf32>
    %80 = arith.mulf %75, %77 : vector<2x32xf32>
    %81 = arith.addf %79, %80 : vector<2x32xf32>
    %82 = math.tanh %81 : vector<2x32xf32>
    %83 = arith.mulf %78, %82 : vector<2x32xf32>
    %c2_39 = arith.constant 2 : index
    %c0_40 = arith.constant 0 : index
    %c0_41 = arith.constant 0 : index
    %84 = vector.load %arg7[%c2_39, %c0_40, %c0_41] : memref<8x2x32xf32, #tpu.memory_space<vmem>>, vector<1x2x32xf32>
    %85 = vector.shape_cast %84 : vector<1x2x32xf32> to vector<2x32xf32>
    %86 = vector.shape_cast %83 : vector<2x32xf32> to vector<1x2x32xf32>
    tpu.vector_store %arg7[%c2_39, %c0_40, %c0_41], %86 {strides = array<i32>} : memref<8x2x32xf32, #tpu.memory_space<vmem>>, vector<1x2x32xf32>,
    %c3 = arith.constant 3 : index
    %c0_42 = arith.constant 0 : index
    %c0_43 = arith.constant 0 : index
    %87 = vector.load %arg6[%c3, %c0_42, %c0_43] : memref<8x2x128xf32, #tpu.memory_space<vmem>>, vector<1x2x128xf32>
    %88 = vector.shape_cast %87 : vector<1x2x128xf32> to vector<2x128xf32>
    %cst_44 = arith.constant dense<0.000000e+00> : vector<2x128xf32>
    %89 = tpu.matmul %83, %2, %cst_44 {dimension_numbers = #tpu.dot_dimension_numbers<[1], [0], [0], [1], [0, 0, 1, 1], [], []>} : vector<2x32xf32>, vector<32x128xf32>, vector<2x128xf32> -> vector<2x128xf32>
    %90 = arith.addf %88, %89 : vector<2x128xf32>
    %91 = arith.negf %90 : vector<2x128xf32>
    %92 = math.exp %91 : vector<2x128xf32>
    %cst_45 = arith.constant 1.000000e+00 : f32
    %93 = vector.broadcast %cst_45 : f32 to vector<2x128xf32>
    %94 = arith.addf %93, %92 : vector<2x128xf32>
    %95 = arith.divf %93, %94 : vector<2x128xf32>
    %96 = math.tanh %90 : vector<2x128xf32>
    %97 = vector.extract_strided_slice %95 {offsets = [0, 0], sizes = [2, 32], strides = [1, 1]} : vector<2x128xf32> to vector<2x32xf32>
    %98 = vector.extract_strided_slice %95 {offsets = [0, 32], sizes = [2, 32], strides = [1, 1]} : vector<2x128xf32> to vector<2x32xf32>
    %99 = vector.extract_strided_slice %96 {offsets = [0, 64], sizes = [2, 32], strides = [1, 1]} : vector<2x128xf32> to vector<2x32xf32>
    %100 = vector.extract_strided_slice %95 {offsets = [0, 96], sizes = [2, 32], strides = [1, 1]} : vector<2x128xf32> to vector<2x32xf32>
    %101 = arith.mulf %98, %81 : vector<2x32xf32>
    %102 = arith.mulf %97, %99 : vector<2x32xf32>
    %103 = arith.addf %101, %102 : vector<2x32xf32>
    %104 = math.tanh %103 : vector<2x32xf32>
    %105 = arith.mulf %100, %104 : vector<2x32xf32>
    %c3_46 = arith.constant 3 : index
    %c0_47 = arith.constant 0 : index
    %c0_48 = arith.constant 0 : index
    %106 = vector.load %arg7[%c3_46, %c0_47, %c0_48] : memref<8x2x32xf32, #tpu.memory_space<vmem>>, vector<1x2x32xf32>
    %107 = vector.shape_cast %106 : vector<1x2x32xf32> to vector<2x32xf32>
    %108 = vector.shape_cast %105 : vector<2x32xf32> to vector<1x2x32xf32>
    tpu.vector_store %arg7[%c3_46, %c0_47, %c0_48], %108 {strides = array<i32>} : memref<8x2x32xf32, #tpu.memory_space<vmem>>, vector<1x2x32xf32>,
    %c4 = arith.constant 4 : index
    %c0_49 = arith.constant 0 : index
    %c0_50 = arith.constant 0 : index
    %109 = vector.load %arg6[%c4, %c0_49, %c0_50] : memref<8x2x128xf32, #tpu.memory_space<vmem>>, vector<1x2x128xf32>
    %110 = vector.shape_cast %109 : vector<1x2x128xf32> to vector<2x128xf32>
    %cst_51 = arith.constant dense<0.000000e+00> : vector<2x128xf32>
    %111 = tpu.matmul %105, %2, %cst_51 {dimension_numbers = #tpu.dot_dimension_numbers<[1], [0], [0], [1], [0, 0, 1, 1], [], []>} : vector<2x32xf32>, vector<32x128xf32>, vector<2x128xf32> -> vector<2x128xf32>
    %112 = arith.addf %110, %111 : vector<2x128xf32>
    %113 = arith.negf %112 : vector<2x128xf32>
    %114 = math.exp %113 : vector<2x128xf32>
    %cst_52 = arith.constant 1.000000e+00 : f32
    %115 = vector.broadcast %cst_52 : f32 to vector<2x128xf32>
    %116 = arith.addf %115, %114 : vector<2x128xf32>
    %117 = arith.divf %115, %116 : vector<2x128xf32>
    %118 = math.tanh %112 : vector<2x128xf32>
    %119 = vector.extract_strided_slice %117 {offsets = [0, 0], sizes = [2, 32], strides = [1, 1]} : vector<2x128xf32> to vector<2x32xf32>
    %120 = vector.extract_strided_slice %117 {offsets = [0, 32], sizes = [2, 32], strides = [1, 1]} : vector<2x128xf32> to vector<2x32xf32>
    %121 = vector.extract_strided_slice %118 {offsets = [0, 64], sizes = [2, 32], strides = [1, 1]} : vector<2x128xf32> to vector<2x32xf32>
    %122 = vector.extract_strided_slice %117 {offsets = [0, 96], sizes = [2, 32], strides = [1, 1]} : vector<2x128xf32> to vector<2x32xf32>
    %123 = arith.mulf %120, %103 : vector<2x32xf32>
    %124 = arith.mulf %119, %121 : vector<2x32xf32>
    %125 = arith.addf %123, %124 : vector<2x32xf32>
    %126 = math.tanh %125 : vector<2x32xf32>
    %127 = arith.mulf %122, %126 : vector<2x32xf32>
    %c4_53 = arith.constant 4 : index
    %c0_54 = arith.constant 0 : index
    %c0_55 = arith.constant 0 : index
    %128 = vector.load %arg7[%c4_53, %c0_54, %c0_55] : memref<8x2x32xf32, #tpu.memory_space<vmem>>, vector<1x2x32xf32>
    %129 = vector.shape_cast %128 : vector<1x2x32xf32> to vector<2x32xf32>
    %130 = vector.shape_cast %127 : vector<2x32xf32> to vector<1x2x32xf32>
    tpu.vector_store %arg7[%c4_53, %c0_54, %c0_55], %130 {strides = array<i32>} : memref<8x2x32xf32, #tpu.memory_space<vmem>>, vector<1x2x32xf32>,
    %c5 = arith.constant 5 : index
    %c0_56 = arith.constant 0 : index
    %c0_57 = arith.constant 0 : index
    %131 = vector.load %arg6[%c5, %c0_56, %c0_57] : memref<8x2x128xf32, #tpu.memory_space<vmem>>, vector<1x2x128xf32>
    %132 = vector.shape_cast %131 : vector<1x2x128xf32> to vector<2x128xf32>
    %cst_58 = arith.constant dense<0.000000e+00> : vector<2x128xf32>
    %133 = tpu.matmul %127, %2, %cst_58 {dimension_numbers = #tpu.dot_dimension_numbers<[1], [0], [0], [1], [0, 0, 1, 1], [], []>} : vector<2x32xf32>, vector<32x128xf32>, vector<2x128xf32> -> vector<2x128xf32>
    %134 = arith.addf %132, %133 : vector<2x128xf32>
    %135 = arith.negf %134 : vector<2x128xf32>
    %136 = math.exp %135 : vector<2x128xf32>
    %cst_59 = arith.constant 1.000000e+00 : f32
    %137 = vector.broadcast %cst_59 : f32 to vector<2x128xf32>
    %138 = arith.addf %137, %136 : vector<2x128xf32>
    %139 = arith.divf %137, %138 : vector<2x128xf32>
    %140 = math.tanh %134 : vector<2x128xf32>
    %141 = vector.extract_strided_slice %139 {offsets = [0, 0], sizes = [2, 32], strides = [1, 1]} : vector<2x128xf32> to vector<2x32xf32>
    %142 = vector.extract_strided_slice %139 {offsets = [0, 32], sizes = [2, 32], strides = [1, 1]} : vector<2x128xf32> to vector<2x32xf32>
    %143 = vector.extract_strided_slice %140 {offsets = [0, 64], sizes = [2, 32], strides = [1, 1]} : vector<2x128xf32> to vector<2x32xf32>
    %144 = vector.extract_strided_slice %139 {offsets = [0, 96], sizes = [2, 32], strides = [1, 1]} : vector<2x128xf32> to vector<2x32xf32>
    %145 = arith.mulf %142, %125 : vector<2x32xf32>
    %146 = arith.mulf %141, %143 : vector<2x32xf32>
    %147 = arith.addf %145, %146 : vector<2x32xf32>
    %148 = math.tanh %147 : vector<2x32xf32>
    %149 = arith.mulf %144, %148 : vector<2x32xf32>
    %c5_60 = arith.constant 5 : index
    %c0_61 = arith.constant 0 : index
    %c0_62 = arith.constant 0 : index
    %150 = vector.load %arg7[%c5_60, %c0_61, %c0_62] : memref<8x2x32xf32, #tpu.memory_space<vmem>>, vector<1x2x32xf32>
    %151 = vector.shape_cast %150 : vector<1x2x32xf32> to vector<2x32xf32>
    %152 = vector.shape_cast %149 : vector<2x32xf32> to vector<1x2x32xf32>
    tpu.vector_store %arg7[%c5_60, %c0_61, %c0_62], %152 {strides = array<i32>} : memref<8x2x32xf32, #tpu.memory_space<vmem>>, vector<1x2x32xf32>,
    %c6 = arith.constant 6 : index
    %c0_63 = arith.constant 0 : index
    %c0_64 = arith.constant 0 : index
    %153 = vector.load %arg6[%c6, %c0_63, %c0_64] : memref<8x2x128xf32, #tpu.memory_space<vmem>>, vector<1x2x128xf32>
    %154 = vector.shape_cast %153 : vector<1x2x128xf32> to vector<2x128xf32>
    %cst_65 = arith.constant dense<0.000000e+00> : vector<2x128xf32>
    %155 = tpu.matmul %149, %2, %cst_65 {dimension_numbers = #tpu.dot_dimension_numbers<[1], [0], [0], [1], [0, 0, 1, 1], [], []>} : vector<2x32xf32>, vector<32x128xf32>, vector<2x128xf32> -> vector<2x128xf32>
    %156 = arith.addf %154, %155 : vector<2x128xf32>
    %157 = arith.negf %156 : vector<2x128xf32>
    %158 = math.exp %157 : vector<2x128xf32>
    %cst_66 = arith.constant 1.000000e+00 : f32
    %159 = vector.broadcast %cst_66 : f32 to vector<2x128xf32>
    %160 = arith.addf %159, %158 : vector<2x128xf32>
    %161 = arith.divf %159, %160 : vector<2x128xf32>
    %162 = math.tanh %156 : vector<2x128xf32>
    %163 = vector.extract_strided_slice %161 {offsets = [0, 0], sizes = [2, 32], strides = [1, 1]} : vector<2x128xf32> to vector<2x32xf32>
    %164 = vector.extract_strided_slice %161 {offsets = [0, 32], sizes = [2, 32], strides = [1, 1]} : vector<2x128xf32> to vector<2x32xf32>
    %165 = vector.extract_strided_slice %162 {offsets = [0, 64], sizes = [2, 32], strides = [1, 1]} : vector<2x128xf32> to vector<2x32xf32>
    %166 = vector.extract_strided_slice %161 {offsets = [0, 96], sizes = [2, 32], strides = [1, 1]} : vector<2x128xf32> to vector<2x32xf32>
    %167 = arith.mulf %164, %147 : vector<2x32xf32>
    %168 = arith.mulf %163, %165 : vector<2x32xf32>
    %169 = arith.addf %167, %168 : vector<2x32xf32>
    %170 = math.tanh %169 : vector<2x32xf32>
    %171 = arith.mulf %166, %170 : vector<2x32xf32>
    %c6_67 = arith.constant 6 : index
    %c0_68 = arith.constant 0 : index
    %c0_69 = arith.constant 0 : index
    %172 = vector.load %arg7[%c6_67, %c0_68, %c0_69] : memref<8x2x32xf32, #tpu.memory_space<vmem>>, vector<1x2x32xf32>
    %173 = vector.shape_cast %172 : vector<1x2x32xf32> to vector<2x32xf32>
    %174 = vector.shape_cast %171 : vector<2x32xf32> to vector<1x2x32xf32>
    tpu.vector_store %arg7[%c6_67, %c0_68, %c0_69], %174 {strides = array<i32>} : memref<8x2x32xf32, #tpu.memory_space<vmem>>, vector<1x2x32xf32>,
    %c7 = arith.constant 7 : index
    %c0_70 = arith.constant 0 : index
    %c0_71 = arith.constant 0 : index
    %175 = vector.load %arg6[%c7, %c0_70, %c0_71] : memref<8x2x128xf32, #tpu.memory_space<vmem>>, vector<1x2x128xf32>
    %176 = vector.shape_cast %175 : vector<1x2x128xf32> to vector<2x128xf32>
    %cst_72 = arith.constant dense<0.000000e+00> : vector<2x128xf32>
    %177 = tpu.matmul %171, %2, %cst_72 {dimension_numbers = #tpu.dot_dimension_numbers<[1], [0], [0], [1], [0, 0, 1, 1], [], []>} : vector<2x32xf32>, vector<32x128xf32>, vector<2x128xf32> -> vector<2x128xf32>
    %178 = arith.addf %176, %177 : vector<2x128xf32>
    %179 = arith.negf %178 : vector<2x128xf32>
    %180 = math.exp %179 : vector<2x128xf32>
    %cst_73 = arith.constant 1.000000e+00 : f32
    %181 = vector.broadcast %cst_73 : f32 to vector<2x128xf32>
    %182 = arith.addf %181, %180 : vector<2x128xf32>
    %183 = arith.divf %181, %182 : vector<2x128xf32>
    %184 = math.tanh %178 : vector<2x128xf32>
    %185 = vector.extract_strided_slice %183 {offsets = [0, 0], sizes = [2, 32], strides = [1, 1]} : vector<2x128xf32> to vector<2x32xf32>
    %186 = vector.extract_strided_slice %183 {offsets = [0, 32], sizes = [2, 32], strides = [1, 1]} : vector<2x128xf32> to vector<2x32xf32>
    %187 = vector.extract_strided_slice %184 {offsets = [0, 64], sizes = [2, 32], strides = [1, 1]} : vector<2x128xf32> to vector<2x32xf32>
    %188 = vector.extract_strided_slice %183 {offsets = [0, 96], sizes = [2, 32], strides = [1, 1]} : vector<2x128xf32> to vector<2x32xf32>
    %189 = arith.mulf %186, %169 : vector<2x32xf32>
    %190 = arith.mulf %185, %187 : vector<2x32xf32>
    %191 = arith.addf %189, %190 : vector<2x32xf32>
    %192 = math.tanh %191 : vector<2x32xf32>
    %193 = arith.mulf %188, %192 : vector<2x32xf32>
    %c7_74 = arith.constant 7 : index
    %c0_75 = arith.constant 0 : index
    %c0_76 = arith.constant 0 : index
    %194 = vector.load %arg7[%c7_74, %c0_75, %c0_76] : memref<8x2x32xf32, #tpu.memory_space<vmem>>, vector<1x2x32xf32>
    %195 = vector.shape_cast %194 : vector<1x2x32xf32> to vector<2x32xf32>
    %196 = vector.shape_cast %193 : vector<2x32xf32> to vector<1x2x32xf32>
    tpu.vector_store %arg7[%c7_74, %c0_75, %c0_76], %196 {strides = array<i32>} : memref<8x2x32xf32, #tpu.memory_space<vmem>>, vector<1x2x32xf32>,
    %c0_77 = arith.constant 0 : index
    %c0_78 = arith.constant 0 : index
    %c0_79 = arith.constant 0 : index
    %197 = vector.load %arg7[%c0_77, %c0_78, %c0_79] : memref<8x2x32xf32, #tpu.memory_space<vmem>>, vector<8x2x32xf32>
    %198 = tpu.transpose %197, [1, 0, 2] : vector<8x2x32xf32> -> vector<2x8x32xf32>
    %199 = vector.shape_cast %198 : vector<2x8x32xf32> to vector<16x32xf32>
    %cst_80 = arith.constant dense<0.000000e+00> : vector<16x16xf32>
    %200 = tpu.matmul %199, %3, %cst_80 {dimension_numbers = #tpu.dot_dimension_numbers<[1], [0], [0], [1], [0, 0, 1, 1], [], []>} : vector<16x32xf32>, vector<32x16xf32>, vector<16x16xf32> -> vector<16x16xf32>
    %201 = vector.broadcast %6 : vector<1x16xf32> to vector<16x16xf32>
    %202 = arith.addf %200, %201 : vector<16x16xf32>
    %c0_81 = arith.constant 0 : index
    %c0_82 = arith.constant 0 : index
    %203 = vector.load %arg4[%c0_81, %c0_82] : memref<16x16xf32, #tpu.memory_space<vmem>>, vector<16x16xf32>
    tpu.vector_store %arg4[%c0_81, %c0_82], %202 {strides = array<i32>} : memref<16x16xf32, #tpu.memory_space<vmem>>, vector<16x16xf32>,
    %204 = tpu.concatenate %193, %191 in 1 : vector<2x32xf32>, vector<2x32xf32> -> vector<2x64xf32>
    %c0_83 = arith.constant 0 : index
    %c0_84 = arith.constant 0 : index
    %205 = vector.load %arg5[%c0_83, %c0_84] : memref<2x64xf32, #tpu.memory_space<vmem>>, vector<2x64xf32>
    tpu.vector_store %arg5[%c0_83, %c0_84], %204 {strides = array<i32>} : memref<2x64xf32, #tpu.memory_space<vmem>>, vector<2x64xf32>,
    return
  }
}

</mosaic_0001>

<llo_original>
// kernel: rllib_policy_forward.1
$region0: #{rllib_policy_forward.1}
  #allocation0 [shape = 'u32[]', space=smem, size = 0x4, offset = 0x4, fixed_abs, tag = 'smem constant byte address 0x4 - core index']
  #allocation1 [shape = 'u32[144,128]{1,0:T(1,128)}', space=vmem, size = 0x12000, scoped, tag = 'internal scratch']
  #allocation2 [shape = 'f32[8,2,128]{2,1,0:T(2,128)}', space=vmem, size = 0x2000, scoped, tag = 'scratch operand']
  #allocation3 [shape = 'f32[8,2,32]{2,1,0:T(2,128)}', space=vmem, size = 0x2000, scoped, tag = 'scratch operand']
  %s0 = inlined_call_operand.vmem [shape: f32[16,32], index: 0, kind: input, shape index: {}]
  %s1 = inlined_call_operand.vmem [shape: f32[2,64], index: 1, kind: input, shape index: {}]
  %s2 = inlined_call_operand.hbm [shape: f32[32,512], index: 2, kind: input, shape index: {}]
  %s3 = inlined_call_operand.vmem [shape: f32[1,384], index: 3, kind: input, shape index: {}]
  %s4 = inlined_call_operand.vmem [shape: f32[16,16], index: 4, kind: output, shape index: {0}]
  %s5 = inlined_call_operand.vmem [shape: f32[2,64], index: 5, kind: output, shape index: {1}]
  %6 = xla_tuple %s4, %s5
  %s7 = sld [smem:[#allocation0]]
  $region38: #{rllib_policy_forward.1} parent=0
    _
  %s9 = ssub.s32 1, %s7
  %s10 = scalar_select 0, %s9, %s7
  $region1: #{rllib_policy_forward.1} parent=0
    #allocation4 [shape = 'u8[65536]{0}', space=vmem, size = 0x10000, scoped, tag = 'input window, operand 2, single buffered']
    #allocation5 [shape = 's32[1]{0}', space=sflag, size = 0x4, scoped, tag = 'scoped memory for rllib_policy_forward.1']
    %11 = vsyncpa [#allocation5], 0
    // Predicated region
    $region2: #{rllib_policy_forward.1} parent=1 // pred_check
      _
    $region3: #{rllib_policy_forward.1} parent=1 // pred_check_branch
      %13 = sbr.rel (0) target = $region5
    $region4: #{rllib_policy_forward.1} parent=1 // pred_region
      _
    $region5: #{rllib_policy_forward.1} parent=1 // pred_fallthru
      _
    // Predicated region
    $region6: #{rllib_policy_forward.1} parent=1 // pred_check
      _
    $region7: #{rllib_policy_forward.1} parent=1 // pred_check_branch
      %15 = sbr.rel (0) target = $region9
    $region8: #{rllib_policy_forward.1} parent=1 // pred_region
      _
    $region9: #{rllib_policy_forward.1} parent=1 // pred_fallthru
      _
    // Predicated region
    $region10: #{rllib_policy_forward.1} parent=1 // pred_check
      _
    $region11: #{rllib_policy_forward.1} parent=1 // pred_check_branch
      %17 = sbr.rel (0) target = $region13
    $region12: #{rllib_policy_forward.1} parent=1 // pred_region
      %s19 = ssub.s32 2048, 2048
      %20 = vsyncadd [#allocation5], %s19
      %s21 = sshll.u32 [#allocation4], 4
      %s22 = int_to_ptr.vmem [resolvable:$true] %s21
      %27 = dma.hbm_to_vmem [thread:$0]  %s2, 2048, %s22, [#allocation5], 512, 512, 32
    $region13: #{rllib_policy_forward.1} parent=1 // pred_fallthru
      _
    // Predicated region
    $region14: #{rllib_policy_forward.1} parent=1 // pred_check
      _
    $region15: #{rllib_policy_forward.1} parent=1 // pred_check_branch
      %29 = sbr.rel (0) target = $region17
    $region16: #{rllib_policy_forward.1} parent=1 // pred_region
      _
    $region17: #{rllib_policy_forward.1} parent=1 // pred_fallthru
      _
    // Predicated region
    $region18: #{rllib_policy_forward.1} parent=1 // pred_check
      _
    $region19: #{rllib_policy_forward.1} parent=1 // pred_check_branch
      %31 = sbr.rel (0) target = $region21
    $region20: #{rllib_policy_forward.1} parent=1 // pred_region
      %32 = dma.done [#allocation5], 2048
    $region21: #{rllib_policy_forward.1} parent=1 // pred_fallthru
      _
    %v33 = vld [vmem:[#allocation4] sm:$0xff]
    %v34 = vld [vmem:[#allocation4 + $0x20] sm:$0xff]
    %v35 = vld [vmem:[#allocation4 + $0x40] sm:$0xff]
    %v36 = vld [vmem:[#allocation4 + $0x60] sm:$0xff]
    %v37 = vld [vmem:[#allocation4 + $0x8] sm:$0xff]
    %v38 = vld [vmem:[#allocation4 + $0x28] sm:$0xff]
    %v39 = vld [vmem:[#allocation4 + $0x48] sm:$0xff]
    %v40 = vld [vmem:[#allocation4 + $0x68] sm:$0xff]
    %v41 = vld [vmem:[#allocation4 + $0x10] sm:$0xff]
    %v42 = vld [vmem:[#allocation4 + $0x30] sm:$0xff]
    %v43 = vld [vmem:[#allocation4 + $0x50] sm:$0xff]
    %v44 = vld [vmem:[#allocation4 + $0x70] sm:$0xff]
    %v45 = vld [vmem:[#allocation4 + $0x18] sm:$0xff]
    %v46 = vld [vmem:[#allocation4 + $0x38] sm:$0xff]
    %v47 = vld [vmem:[#allocation4 + $0x58] sm:$0xff]
    %v48 = vld [vmem:[#allocation4 + $0x78] sm:$0xff]
    %v49 = vld [vmem:[%s3] sm:$0x1]
    %v50 = vld [vmem:[%s3 + $0x1] sm:$0x1]
    %v51 = vld [vmem:[%s3 + $0x2] sm:$0x1]
    %v52 = vld [vmem:[%s0] sm:$0xff]
    %v53 = vld [vmem:[%s0 + $0x8] sm:$0xff]
    %v55 = vlaneseq
    %v56 = vshrl.u32 %v55, 7
    %v57 = vsub.s32 0, %v56
    %v58 = vrot.slane %v49, %v57
    %vm60 = vcmask 261120
    %v62 = vsel %vm60, %v52, 0
    %v65 = vsel %vm60, %v53, 0
    %67 = vmatprep.subr.mxu0 0.0
    %68 = vmatpush1.msra.mxu0 %v33
    %69 = vmatprep.subr.mxu0 0.0
    %70 = vmatpush1.msra.mxu0 %v34
    %71 = vmatprep.subr.mxu0 0.0
    %72 = vmatpush1.msra.mxu0 %v35
    %73 = vmatprep.subr.mxu0 0.0
    %74 = vmatpush1.msra.mxu0 %v36
    %75 = vmatprep.subr.mxu0 0.0
    %76 = vmatpush1.msra.mxu0 0.0
    %77 = vmatprep.subr.mxu0 0.0
    %78 = vmatpush1.msra.mxu0 0.0
    %79 = vmatprep.subr.mxu0 0.0
    %80 = vmatpush1.msra.mxu0 0.0
    %81 = vmatprep.subr.mxu0 0.0
    %82 = vmatpush1.msra.mxu0 0.0
    %83 = vmatprep.subr.mxu0 0.0
    %84 = vmatpush1.msra.mxu0 0.0
    %85 = vmatprep.subr.mxu0 0.0
    %86 = vmatpush1.msra.mxu0 0.0
    %87 = vmatprep.subr.mxu0 0.0
    %88 = vmatpush1.msra.mxu0 0.0
    %89 = vmatprep.subr.mxu0 0.0
    %90 = vmatpush1.msra.mxu0 0.0
    %91 = vmatprep.subr.mxu0 0.0
    %92 = vmatpush1.msra.mxu0 0.0
    %93 = vmatprep.subr.mxu0 0.0
    %94 = vmatpush1.msra.mxu0 0.0
    %95 = vmatprep.subr.mxu0 0.0
    %96 = vmatpush1.msra.mxu0 0.0
    %97 = vmatprep.subr.mxu0 0.0
    %98 = vmatpush1.msra.mxu0 0.0
    %99 = vmatprep.subr.mxu0 0.0
    %100 = vmatpush1.msra.mxu0 0.0
    %101 = vmatprep.subr.mxu0 0.0
    %102 = vmatpush1.msra.mxu0 0.0
    %103 = vmatprep.subr.mxu0 0.0
    %104 = vmatpush1.msra.mxu0 0.0
    %105 = vmatprep.subr.mxu0 0.0
    %106 = vmatpush1.msra.mxu0 0.0
    %107 = vmatprep.subr.mxu0 0.0
    %108 = vmatpush1.msra.mxu0 0.0
    %109 = vmatprep.subr.mxu0 0.0
    %110 = vmatpush1.msra.mxu0 0.0
    %111 = vmatprep.subr.mxu0 0.0
    %112 = vmatpush1.msra.mxu0 0.0
    %113 = vmatprep.subr.mxu0 0.0
    %114 = vmatpush1.msra.mxu0 0.0
    %115 = vmatprep.subr.mxu0 0.0
    %116 = vmatpush1.msra.mxu0 0.0
    %117 = vmatprep.subr.mxu0 0.0
    %118 = vmatpush1.msra.mxu0 0.0
    %119 = vmatprep.subr.mxu0 0.0
    %120 = vmatpush1.msra.mxu0 0.0
    %121 = vmatprep.subr.mxu0 0.0
    %122 = vmatpush1.msra.mxu0 0.0
    %123 = vmatprep.subr.mxu0 0.0
    %124 = vmatpush1.msra.mxu0 0.0
    %125 = vmatprep.subr.mxu0 0.0
    %126 = vmatpush1.msra.mxu0 0.0
    %127 = vmatprep.subr.mxu0 0.0
    %128 = vmatpush1.msra.mxu0 0.0
    %129 = vmatprep.subr.mxu0 0.0
    %130 = vmatpush1.msra.mxu0 0.0
    %131 = vmatprep.mubr.f32.mxu0 0.0
    %132 = vmatmul.mubr.f32.gmra.mrb[0].mxu0 %v62
    %v133 = vpop.f32.mrb[0].mxu0
    %v134 = vadd.f32 %v58, %v133
    %v135 = vpop.f32.mrb[0].mxu0
    %136 = vmatprep.mubr.f32.mxu0 0.0
    %137 = vmatmul.mubr.f32.gmra.mrb[0].mxu0 %v65
    %v138 = vpop.f32.mrb[0].mxu0
    %v139 = vadd.f32 %v58, %v138
    %v140 = vpop.f32.mrb[0].mxu0
    %141 = vdwg.mxu0
    %v142 = vmax.f32 %v134, 0.0
    %v143 = vmax.f32 %v139, 0.0
    %v145 = vlaneseq
    %v146 = vshrl.u32 %v145, 7
    %v147 = vsub.s32 0, %v146
    %v148 = vrot.slane %v50, %v147
    %v151 = vsel %vm60, %v142, 0
    %v154 = vsel %vm60, %v143, 0
    %156 = vmatprep.subr.mxu0 0.0
    %157 = vmatpush1.msra.mxu0 %v37
    %158 = vmatprep.subr.mxu0 0.0
    %159 = vmatpush1.msra.mxu0 %v38
    %160 = vmatprep.subr.mxu0 0.0
    %161 = vmatpush1.msra.mxu0 %v39
    %162 = vmatprep.subr.mxu0 0.0
    %163 = vmatpush1.msra.mxu0 %v40
    %164 = vmatprep.subr.mxu0 0.0
    %165 = vmatpush1.msra.mxu0 0.0
    %166 = vmatprep.subr.mxu0 0.0
    %167 = vmatpush1.msra.mxu0 0.0
    %168 = vmatprep.subr.mxu0 0.0
    %169 = vmatpush1.msra.mxu0 0.0
    %170 = vmatprep.subr.mxu0 0.0
    %171 = vmatpush1.msra.mxu0 0.0
    %172 = vmatprep.subr.mxu0 0.0
    %173 = vmatpush1.msra.mxu0 0.0
    %174 = vmatprep.subr.mxu0 0.0
    %175 = vmatpush1.msra.mxu0 0.0
    %176 = vmatprep.subr.mxu0 0.0
    %177 = vmatpush1.msra.mxu0 0.0
    %178 = vmatprep.subr.mxu0 0.0
    %179 = vmatpush1.msra.mxu0 0.0
    %180 = vmatprep.subr.mxu0 0.0
    %181 = vmatpush1.msra.mxu0 0.0
    %182 = vmatprep.subr.mxu0 0.0
    %183 = vmatpush1.msra.mxu0 0.0
    %184 = vmatprep.subr.mxu0 0.0
    %185 = vmatpush1.msra.mxu0 0.0
    %186 = vmatprep.subr.mxu0 0.0
    %187 = vmatpush1.msra.mxu0 0.0
    %188 = vmatprep.subr.mxu0 0.0
    %189 = vmatpush1.msra.mxu0 0.0
    %190 = vmatprep.subr.mxu0 0.0
    %191 = vmatpush1.msra.mxu0 0.0
    %192 = vmatprep.subr.mxu0 0.0
    %193 = vmatpush1.msra.mxu0 0.0
    %194 = vmatprep.subr.mxu0 0.0
    %195 = vmatpush1.msra.mxu0 0.0
    %196 = vmatprep.subr.mxu0 0.0
    %197 = vmatpush1.msra.mxu0 0.0
    %198 = vmatprep.subr.mxu0 0.0
    %199 = vmatpush1.msra.mxu0 0.0
    %200 = vmatprep.subr.mxu0 0.0
    %201 = vmatpush1.msra.mxu0 0.0
    %202 = vmatprep.subr.mxu0 0.0
    %203 = vmatpush1.msra.mxu0 0.0
    %204 = vmatprep.subr.mxu0 0.0
    %205 = vmatpush1.msra.mxu0 0.0
    %206 = vmatprep.subr.mxu0 0.0
    %207 = vmatpush1.msra.mxu0 0.0
    %208 = vmatprep.subr.mxu0 0.0
    %209 = vmatpush1.msra.mxu0 0.0
    %210 = vmatprep.subr.mxu0 0.0
    %211 = vmatpush1.msra.mxu0 0.0
    %212 = vmatprep.subr.mxu0 0.0
    %213 = vmatpush1.msra.mxu0 0.0
    %214 = vmatprep.subr.mxu0 0.0
    %215 = vmatpush1.msra.mxu0 0.0
    %216 = vmatprep.subr.mxu0 0.0
    %217 = vmatpush1.msra.mxu0 0.0
    %218 = vmatprep.subr.mxu0 0.0
    %219 = vmatpush1.msra.mxu0 0.0
    %220 = vmatprep.mubr.f32.mxu0 0.0
    %221 = vmatmul.mubr.f32.gmra.mrb[0].mxu0 %v151
    %v222 = vpop.f32.mrb[0].mxu0
    %v223 = vadd.f32 %v148, %v222
    %v224 = vpop.f32.mrb[0].mxu0
    %225 = vmatprep.mubr.f32.mxu0 0.0
    %226 = vmatmul.mubr.f32.gmra.mrb[0].mxu0 %v154
    %v227 = vpop.f32.mrb[0].mxu0
    %v228 = vadd.f32 %v148, %v227
    %v229 = vpop.f32.mrb[0].mxu0
    %230 = vdwg.mxu0
    %v231 = vcombine.high %v223, 0.0
    %v233 = vunpack.c.l.s4 1983009808
    %v234 = vunpack.c.0.s8 %v233
    %v235 = vlaneseq
    %v236 = vshrl.u32 %v235, 7
    %v237 = vsub.s32 %v234, %v236
    %v238 = vrot.slane %v223, %v237
    %v240 = vunpack.c.l.s4 1983009808
    %v241 = vunpack.c.0.s8 %v240
    %v242 = vlaneseq
    %v243 = vshrl.u32 %v242, 7
    %v244 = vsub.s32 %v241, %v243
    %v245 = vrot.slane %v231, %v244
    %v246 = vcombine.high %v228, 0.0
    %v248 = vunpack.c.l.s4 1983009808
    %v249 = vunpack.c.0.s8 %v248
    %v250 = vlaneseq
    %v251 = vshrl.u32 %v250, 7
    %v252 = vsub.s32 %v249, %v251
    %v253 = vrot.slane %v228, %v252
    %v255 = vunpack.c.l.s4 1983009808
    %v256 = vunpack.c.0.s8 %v255
    %v257 = vlaneseq
    %v258 = vshrl.u32 %v257, 7
    %v259 = vsub.s32 %v256, %v258
    %v260 = vrot.slane %v246, %v259
    %v261 = vcombine.low %v238, %v253
    %v262 = vcombine.high %v238, %v253
    %v264 = vunpack.c.l.s4 1934713408
    %v265 = vunpack.c.0.s8 %v264
    %v266 = vlaneseq
    %v267 = vshrl.u32 %v266, 7
    %v268 = vsub.s32 %v265, %v267
    %v269 = vrot.slane %v261, %v268
    %v271 = vunpack.c.l.s4 1934713408
    %v272 = vunpack.c.0.s8 %v271
    %v273 = vlaneseq
    %v274 = vshrl.u32 %v273, 7
    %v275 = vsub.s32 %v272, %v274
    %v276 = vrot.slane %v262, %v275
    %v277 = vcombine.low %v245, %v260
    %v278 = vcombine.high %v245, %v260
    %v280 = vunpack.c.l.s4 1934713408
    %v281 = vunpack.c.0.s8 %v280
    %v282 = vlaneseq
    %v283 = vshrl.u32 %v282, 7
    %v284 = vsub.s32 %v281, %v283
    %v285 = vrot.slane %v277, %v284
    %v287 = vunpack.c.l.s4 1934713408
    %v288 = vunpack.c.0.s8 %v287
    %v289 = vlaneseq
    %v290 = vshrl.u32 %v289, 7
    %v291 = vsub.s32 %v288, %v290
    %v292 = vrot.slane %v278, %v291
    %v293 = vcombine.high %v269, 0.0
    %v294 = vcombine.high %v276, 0.0
    %v295 = vcombine.high %v285, 0.0
    %v296 = vcombine.high %v292, 0.0
    %297 = vst [vmem:[#allocation2] sm:$0x3] %v269
    %298 = vst [vmem:[#allocation2 + $0x2] sm:$0x3] %v293
    %299 = vst [vmem:[#allocation2 + $0x4] sm:$0x3] %v276
    %300 = vst [vmem:[#allocation2 + $0x6] sm:$0x3] %v294
    %301 = vst [vmem:[#allocation2 + $0x8] sm:$0x3] %v285
    %302 = vst [vmem:[#allocation2 + $0xa] sm:$0x3] %v295
    %303 = vst [vmem:[#allocation2 + $0xc] sm:$0x3] %v292
    %304 = vst [vmem:[#allocation2 + $0xe] sm:$0x3] %v296
    %v305 = vld [vmem:[%s1] sm:$0x3]
    %v306 = vld [vmem:[#allocation2] sm:$0x3]
    %v308 = vsel %vm60, %v305, 0
    %310 = vmatprep.subr.mxu0 0.0
    %311 = vmatpush1.msra.mxu0 %v41
    %312 = vmatprep.subr.mxu0 0.0
    %313 = vmatpush1.msra.mxu0 %v42
    %314 = vmatprep.subr.mxu0 0.0
    %315 = vmatpush1.msra.mxu0 %v43
    %316 = vmatprep.subr.mxu0 0.0
    %317 = vmatpush1.msra.mxu0 %v44
    %318 = vmatprep.subr.mxu0 0.0
    %319 = vmatpush1.msra.mxu0 0.0
    %320 = vmatprep.subr.mxu0 0.0
    %321 = vmatpush1.msra.mxu0 0.0
    %322 = vmatprep.subr.mxu0 0.0
    %323 = vmatpush1.msra.mxu0 0.0
    %324 = vmatprep.subr.mxu0 0.0
    %325 = vmatpush1.msra.mxu0 0.0
    %326 = vmatprep.subr.mxu0 0.0
    %327 = vmatpush1.msra.mxu0 0.0
    %328 = vmatprep.subr.mxu0 0.0
    %329 = vmatpush1.msra.mxu0 0.0
    %330 = vmatprep.subr.mxu0 0.0
    %331 = vmatpush1.msra.mxu0 0.0
    %332 = vmatprep.subr.mxu0 0.0
    %333 = vmatpush1.msra.mxu0 0.0
    %334 = vmatprep.subr.mxu0 0.0
    %335 = vmatpush1.msra.mxu0 0.0
    %336 = vmatprep.subr.mxu0 0.0
    %337 = vmatpush1.msra.mxu0 0.0
    %338 = vmatprep.subr.mxu0 0.0
    %339 = vmatpush1.msra.mxu0 0.0
    %340 = vmatprep.subr.mxu0 0.0
    %341 = vmatpush1.msra.mxu0 0.0
    %342 = vmatprep.subr.mxu0 0.0
    %343 = vmatpush1.msra.mxu0 0.0
    %344 = vmatprep.subr.mxu0 0.0
    %345 = vmatpush1.msra.mxu0 0.0
    %346 = vmatprep.subr.mxu0 0.0
    %347 = vmatpush1.msra.mxu0 0.0
    %348 = vmatprep.subr.mxu0 0.0
    %349 = vmatpush1.msra.mxu0 0.0
    %350 = vmatprep.subr.mxu0 0.0
    %351 = vmatpush1.msra.mxu0 0.0
    %352 = vmatprep.subr.mxu0 0.0
    %353 = vmatpush1.msra.mxu0 0.0
    %354 = vmatprep.subr.mxu0 0.0
    %355 = vmatpush1.msra.mxu0 0.0
    %356 = vmatprep.subr.mxu0 0.0
    %357 = vmatpush1.msra.mxu0 0.0
    %358 = vmatprep.subr.mxu0 0.0
    %359 = vmatpush1.msra.mxu0 0.0
    %360 = vmatprep.subr.mxu0 0.0
    %361 = vmatpush1.msra.mxu0 0.0
    %362 = vmatprep.subr.mxu0 0.0
    %363 = vmatpush1.msra.mxu0 0.0
    %364 = vmatprep.subr.mxu0 0.0
    %365 = vmatpush1.msra.mxu0 0.0
    %366 = vmatprep.subr.mxu0 0.0
    %367 = vmatpush1.msra.mxu0 0.0
    %368 = vmatprep.subr.mxu0 0.0
    %369 = vmatpush1.msra.mxu0 0.0
    %370 = vmatprep.subr.mxu0 0.0
    %371 = vmatpush1.msra.mxu0 0.0
    %372 = vmatprep.subr.mxu0 0.0
    %373 = vmatpush1.msra.mxu0 0.0
    %374 = vmatprep.mubr.f32.mxu0 0.0
    %375 = vmatmul.mubr.f32.gmra.mrb[0].mxu0 %v308
    %v376 = vpop.f32.mrb[0].mxu0
    %v377 = vadd.f32 0.0, %v376
    %v378 = vpop.f32.mrb[0].mxu0
    %379 = vdwg.mxu0
    %v380 = vadd.f32 %v306, %v377
    %v381 = vxor.u32 %v380, 2147483648
    %v382 = vmul.f32 %v381, 1.442695
    %v383 = vpow.pop %v382
    %v384 = vadd.f32 %v383, 1.0
    %v385 = vrcp.pop %v384
    %v386 = vmul.f32 1.0, %v385
    %v387 = vtanh.pop %v380
    %v388 = vmul.f32 %v386, %v305
    %390 = vrot.lane.b32.xlu0 %v387, 64
    %v391 = vpop.permute.xlu0 %390
    %v393 = vmul.f32 %v386, %v391
    %395 = vrot.lane.b32.xlu0 %v393, 32
    %v396 = vpop.permute.xlu0 %395
    %v398 = vadd.f32 %v388, %v396
    %v399 = vtanh.pop %v398
    %401 = vrot.lane.b32.xlu0 %v399, 64
    %v402 = vpop.permute.xlu0 %401
    %v404 = vmul.f32 %v386, %v402
    %406 = vrot.lane.b32.xlu0 %v404, 32
    %v407 = vpop.permute.xlu0 %406
    %vm409 = vcmask 254976
    %410 = vst.msk [vmem:[#allocation3] sm:$0x3] %vm409, %v407
    %s411 = scalar_lea.vmem [#allocation2], 2
    %v412 = vld [vmem:[%s411] sm:$0x3]
    %v413 = vsel %vm60, %v407, 0
    %415 = vmatprep.subr.mxu0 0.0
    %416 = vmatpush1.msra.mxu0 %v41
    %417 = vmatprep.subr.mxu0 0.0
    %418 = vmatpush1.msra.mxu0 %v42
    %419 = vmatprep.subr.mxu0 0.0
    %420 = vmatpush1.msra.mxu0 %v43
    %421 = vmatprep.subr.mxu0 0.0
    %422 = vmatpush1.msra.mxu0 %v44
    %423 = vmatprep.subr.mxu0 0.0
    %424 = vmatpush1.msra.mxu0 0.0
    %425 = vmatprep.subr.mxu0 0.0
    %426 = vmatpush1.msra.mxu0 0.0
    %427 = vmatprep.subr.mxu0 0.0
    %428 = vmatpush1.msra.mxu0 0.0
    %429 = vmatprep.subr.mxu0 0.0
    %430 = vmatpush1.msra.mxu0 0.0
    %431 = vmatprep.subr.mxu0 0.0
    %432 = vmatpush1.msra.mxu0 0.0
    %433 = vmatprep.subr.mxu0 0.0
    %434 = vmatpush1.msra.mxu0 0.0
    %435 = vmatprep.subr.mxu0 0.0
    %436 = vmatpush1.msra.mxu0 0.0
    %437 = vmatprep.subr.mxu0 0.0
    %438 = vmatpush1.msra.mxu0 0.0
    %439 = vmatprep.subr.mxu0 0.0
    %440 = vmatpush1.msra.mxu0 0.0
    %441 = vmatprep.subr.mxu0 0.0
    %442 = vmatpush1.msra.mxu0 0.0
    %443 = vmatprep.subr.mxu0 0.0
    %444 = vmatpush1.msra.mxu0 0.0
    %445 = vmatprep.subr.mxu0 0.0
    %446 = vmatpush1.msra.mxu0 0.0
    %447 = vmatprep.subr.mxu0 0.0
    %448 = vmatpush1.msra.mxu0 0.0
    %449 = vmatprep.subr.mxu0 0.0
    %450 = vmatpush1.msra.mxu0 0.0
    %451 = vmatprep.subr.mxu0 0.0
    %452 = vmatpush1.msra.mxu0 0.0
    %453 = vmatprep.subr.mxu0 0.0
    %454 = vmatpush1.msra.mxu0 0.0
    %455 = vmatprep.subr.mxu0 0.0
    %456 = vmatpush1.msra.mxu0 0.0
    %457 = vmatprep.subr.mxu0 0.0
    %458 = vmatpush1.msra.mxu0 0.0
    %459 = vmatprep.subr.mxu0 0.0
    %460 = vmatpush1.msra.mxu0 0.0
    %461 = vmatprep.subr.mxu0 0.0
    %462 = vmatpush1.msra.mxu0 0.0
    %463 = vmatprep.subr.mxu0 0.0
    %464 = vmatpush1.msra.mxu0 0.0
    %465 = vmatprep.subr.mxu0 0.0
    %466 = vmatpush1.msra.mxu0 0.0
    %467 = vmatprep.subr.mxu0 0.0
    %468 = vmatpush1.msra.mxu0 0.0
    %469 = vmatprep.subr.mxu0 0.0
    %470 = vmatpush1.msra.mxu0 0.0
    %471 = vmatprep.subr.mxu0 0.0
    %472 = vmatpush1.msra.mxu0 0.0
    %473 = vmatprep.subr.mxu0 0.0
    %474 = vmatpush1.msra.mxu0 0.0
    %475 = vmatprep.subr.mxu0 0.0
    %476 = vmatpush1.msra.mxu0 0.0
    %477 = vmatprep.subr.mxu0 0.0
    %478 = vmatpush1.msra.mxu0 0.0
    %479 = vmatprep.mubr.f32.mxu0 0.0
    %480 = vmatmul.mubr.f32.gmra.mrb[0].mxu0 %v413
    %v481 = vpop.f32.mrb[0].mxu0
    %v482 = vadd.f32 0.0, %v481
    %v483 = vpop.f32.mrb[0].mxu0
    %484 = vdwg.mxu0
    %v485 = vadd.f32 %v412, %v482
    %v486 = vxor.u32 %v485, 2147483648
    %v487 = vmul.f32 %v486, 1.442695
    %v488 = vpow.pop %v487
    %v489 = vadd.f32 %v488, 1.0
    %v490 = vrcp.pop %v489
    %v491 = vmul.f32 1.0, %v490
    %v492 = vtanh.pop %v485
    %v493 = vmul.f32 %v491, %v398
    %495 = vrot.lane.b32.xlu0 %v492, 64
    %v496 = vpop.permute.xlu0 %495
    %v498 = vmul.f32 %v491, %v496
    %500 = vrot.lane.b32.xlu0 %v498, 32
    %v501 = vpop.permute.xlu0 %500
    %v503 = vadd.f32 %v493, %v501
    %v504 = vtanh.pop %v503
    %506 = vrot.lane.b32.xlu0 %v504, 64
    %v507 = vpop.permute.xlu0 %506
    %v509 = vmul.f32 %v491, %v507
    %511 = vrot.lane.b32.xlu0 %v509, 32
    %v512 = vpop.permute.xlu0 %511
    %s514 = scalar_lea.vmem [#allocation3], 2
    %515 = vst.msk [vmem:[%s514] sm:$0x3] %vm409, %v512
    %s516 = scalar_lea.vmem [#allocation2], 4
    %v517 = vld [vmem:[%s516] sm:$0x3]
    %v518 = vsel %vm60, %v512, 0
    %520 = vmatprep.subr.mxu0 0.0
    %521 = vmatpush1.msra.mxu0 %v41
    %522 = vmatprep.subr.mxu0 0.0
    %523 = vmatpush1.msra.mxu0 %v42
    %524 = vmatprep.subr.mxu0 0.0
    %525 = vmatpush1.msra.mxu0 %v43
    %526 = vmatprep.subr.mxu0 0.0
    %527 = vmatpush1.msra.mxu0 %v44
    %528 = vmatprep.subr.mxu0 0.0
    %529 = vmatpush1.msra.mxu0 0.0
    %530 = vmatprep.subr.mxu0 0.0
    %531 = vmatpush1.msra.mxu0 0.0
    %532 = vmatprep.subr.mxu0 0.0
    %533 = vmatpush1.msra.mxu0 0.0
    %534 = vmatprep.subr.mxu0 0.0
    %535 = vmatpush1.msra.mxu0 0.0
    %536 = vmatprep.subr.mxu0 0.0
    %537 = vmatpush1.msra.mxu0 0.0
    %538 = vmatprep.subr.mxu0 0.0
    %539 = vmatpush1.msra.mxu0 0.0
    %540 = vmatprep.subr.mxu0 0.0
    %541 = vmatpush1.msra.mxu0 0.0
    %542 = vmatprep.subr.mxu0 0.0
    %543 = vmatpush1.msra.mxu0 0.0
    %544 = vmatprep.subr.mxu0 0.0
    %545 = vmatpush1.msra.mxu0 0.0
    %546 = vmatprep.subr.mxu0 0.0
    %547 = vmatpush1.msra.mxu0 0.0
    %548 = vmatprep.subr.mxu0 0.0
    %549 = vmatpush1.msra.mxu0 0.0
    %550 = vmatprep.subr.mxu0 0.0
    %551 = vmatpush1.msra.mxu0 0.0
    %552 = vmatprep.subr.mxu0 0.0
    %553 = vmatpush1.msra.mxu0 0.0
    %554 = vmatprep.subr.mxu0 0.0
    %555 = vmatpush1.msra.mxu0 0.0
    %556 = vmatprep.subr.mxu0 0.0
    %557 = vmatpush1.msra.mxu0 0.0
    %558 = vmatprep.subr.mxu0 0.0
    %559 = vmatpush1.msra.mxu0 0.0
    %560 = vmatprep.subr.mxu0 0.0
    %561 = vmatpush1.msra.mxu0 0.0
    %562 = vmatprep.subr.mxu0 0.0
    %563 = vmatpush1.msra.mxu0 0.0
    %564 = vmatprep.subr.mxu0 0.0
    %565 = vmatpush1.msra.mxu0 0.0
    %566 = vmatprep.subr.mxu0 0.0
    %567 = vmatpush1.msra.mxu0 0.0
    %568 = vmatprep.subr.mxu0 0.0
    %569 = vmatpush1.msra.mxu0 0.0
    %570 = vmatprep.subr.mxu0 0.0
    %571 = vmatpush1.msra.mxu0 0.0
    %572 = vmatprep.subr.mxu0 0.0
    %573 = vmatpush1.msra.mxu0 0.0
    %574 = vmatprep.subr.mxu0 0.0
    %575 = vmatpush1.msra.mxu0 0.0
    %576 = vmatprep.subr.mxu0 0.0
    %577 = vmatpush1.msra.mxu0 0.0
    %578 = vmatprep.subr.mxu0 0.0
    %579 = vmatpush1.msra.mxu0 0.0
    %580 = vmatprep.subr.mxu0 0.0
    %581 = vmatpush1.msra.mxu0 0.0
    %582 = vmatprep.subr.mxu0 0.0
    %583 = vmatpush1.msra.mxu0 0.0
    %584 = vmatprep.mubr.f32.mxu0 0.0
    %585 = vmatmul.mubr.f32.gmra.mrb[0].mxu0 %v518
    %v586 = vpop.f32.mrb[0].mxu0
    %v587 = vadd.f32 0.0, %v586
    %v588 = vpop.f32.mrb[0].mxu0
    %589 = vdwg.mxu0
    %v590 = vadd.f32 %v517, %v587
    %v591 = vxor.u32 %v590, 2147483648
    %v592 = vmul.f32 %v591, 1.442695
    %v593 = vpow.pop %v592
    %v594 = vadd.f32 %v593, 1.0
    %v595 = vrcp.pop %v594
    %v596 = vmul.f32 1.0, %v595
    %v597 = vtanh.pop %v590
    %v598 = vmul.f32 %v596, %v503
    %600 = vrot.lane.b32.xlu0 %v597, 64
    %v601 = vpop.permute.xlu0 %600
    %v603 = vmul.f32 %v596, %v601
    %605 = vrot.lane.b32.xlu0 %v603, 32
    %v606 = vpop.permute.xlu0 %605
    %v608 = vadd.f32 %v598, %v606
    %v609 = vtanh.pop %v608
    %611 = vrot.lane.b32.xlu0 %v609, 64
    %v612 = vpop.permute.xlu0 %611
    %v614 = vmul.f32 %v596, %v612
    %616 = vrot.lane.b32.xlu0 %v614, 32
    %v617 = vpop.permute.xlu0 %616
    %s619 = scalar_lea.vmem [#allocation3], 4
    %620 = vst.msk [vmem:[%s619] sm:$0x3] %vm409, %v617
    %s621 = scalar_lea.vmem [#allocation2], 6
    %v622 = vld [vmem:[%s621] sm:$0x3]
    %v623 = vsel %vm60, %v617, 0
    %625 = vmatprep.subr.mxu0 0.0
    %626 = vmatpush1.msra.mxu0 %v41
    %627 = vmatprep.subr.mxu0 0.0
    %628 = vmatpush1.msra.mxu0 %v42
    %629 = vmatprep.subr.mxu0 0.0
    %630 = vmatpush1.msra.mxu0 %v43
    %631 = vmatprep.subr.mxu0 0.0
    %632 = vmatpush1.msra.mxu0 %v44
    %633 = vmatprep.subr.mxu0 0.0
    %634 = vmatpush1.msra.mxu0 0.0
    %635 = vmatprep.subr.mxu0 0.0
    %636 = vmatpush1.msra.mxu0 0.0
    %637 = vmatprep.subr.mxu0 0.0
    %638 = vmatpush1.msra.mxu0 0.0
    %639 = vmatprep.subr.mxu0 0.0
    %640 = vmatpush1.msra.mxu0 0.0
    %641 = vmatprep.subr.mxu0 0.0
    %642 = vmatpush1.msra.mxu0 0.0
    %643 = vmatprep.subr.mxu0 0.0
    %644 = vmatpush1.msra.mxu0 0.0
    %645 = vmatprep.subr.mxu0 0.0
    %646 = vmatpush1.msra.mxu0 0.0
    %647 = vmatprep.subr.mxu0 0.0
    %648 = vmatpush1.msra.mxu0 0.0
    %649 = vmatprep.subr.mxu0 0.0
    %650 = vmatpush1.msra.mxu0 0.0
    %651 = vmatprep.subr.mxu0 0.0
    %652 = vmatpush1.msra.mxu0 0.0
    %653 = vmatprep.subr.mxu0 0.0
    %654 = vmatpush1.msra.mxu0 0.0
    %655 = vmatprep.subr.mxu0 0.0
    %656 = vmatpush1.msra.mxu0 0.0
    %657 = vmatprep.subr.mxu0 0.0
    %658 = vmatpush1.msra.mxu0 0.0
    %659 = vmatprep.subr.mxu0 0.0
    %660 = vmatpush1.msra.mxu0 0.0
    %661 = vmatprep.subr.mxu0 0.0
    %662 = vmatpush1.msra.mxu0 0.0
    %663 = vmatprep.subr.mxu0 0.0
    %664 = vmatpush1.msra.mxu0 0.0
    %665 = vmatprep.subr.mxu0 0.0
    %666 = vmatpush1.msra.mxu0 0.0
    %667 = vmatprep.subr.mxu0 0.0
    %668 = vmatpush1.msra.mxu0 0.0
    %669 = vmatprep.subr.mxu0 0.0
    %670 = vmatpush1.msra.mxu0 0.0
    %671 = vmatprep.subr.mxu0 0.0
    %672 = vmatpush1.msra.mxu0 0.0
    %673 = vmatprep.subr.mxu0 0.0
    %674 = vmatpush1.msra.mxu0 0.0
    %675 = vmatprep.subr.mxu0 0.0
    %676 = vmatpush1.msra.mxu0 0.0
    %677 = vmatprep.subr.mxu0 0.0
    %678 = vmatpush1.msra.mxu0 0.0
    %679 = vmatprep.subr.mxu0 0.0
    %680 = vmatpush1.msra.mxu0 0.0
    %681 = vmatprep.subr.mxu0 0.0
    %682 = vmatpush1.msra.mxu0 0.0
    %683 = vmatprep.subr.mxu0 0.0
    %684 = vmatpush1.msra.mxu0 0.0
    %685 = vmatprep.subr.mxu0 0.0
    %686 = vmatpush1.msra.mxu0 0.0
    %687 = vmatprep.subr.mxu0 0.0
    %688 = vmatpush1.msra.mxu0 0.0
    %689 = vmatprep.mubr.f32.mxu0 0.0
    %690 = vmatmul.mubr.f32.gmra.mrb[0].mxu0 %v623
    %v691 = vpop.f32.mrb[0].mxu0
    %v692 = vadd.f32 0.0, %v691
    %v693 = vpop.f32.mrb[0].mxu0
    %694 = vdwg.mxu0
    %v695 = vadd.f32 %v622, %v692
    %v696 = vxor.u32 %v695, 2147483648
    %v697 = vmul.f32 %v696, 1.442695
    %v698 = vpow.pop %v697
    %v699 = vadd.f32 %v698, 1.0
    %v700 = vrcp.pop %v699
    %v701 = vmul.f32 1.0, %v700
    %v702 = vtanh.pop %v695
    %v703 = vmul.f32 %v701, %v608
    %705 = vrot.lane.b32.xlu0 %v702, 64
    %v706 = vpop.permute.xlu0 %705
    %v708 = vmul.f32 %v701, %v706
    %710 = vrot.lane.b32.xlu0 %v708, 32
    %v711 = vpop.permute.xlu0 %710
    %v713 = vadd.f32 %v703, %v711
    %v714 = vtanh.pop %v713
    %716 = vrot.lane.b32.xlu0 %v714, 64
    %v717 = vpop.permute.xlu0 %716
    %v719 = vmul.f32 %v701, %v717
    %721 = vrot.lane.b32.xlu0 %v719, 32
    %v722 = vpop.permute.xlu0 %721
    %s724 = scalar_lea.vmem [#allocation3], 6
    %725 = vst.msk [vmem:[%s724] sm:$0x3] %vm409, %v722
    %s726 = scalar_lea.vmem [#allocation2], 8
    %v727 = vld [vmem:[%s726] sm:$0x3]
    %v728 = vsel %vm60, %v722, 0
    %730 = vmatprep.subr.mxu0 0.0
    %731 = vmatpush1.msra.mxu0 %v41
    %732 = vmatprep.subr.mxu0 0.0
    %733 = vmatpush1.msra.mxu0 %v42
    %734 = vmatprep.subr.mxu0 0.0
    %735 = vmatpush1.msra.mxu0 %v43
    %736 = vmatprep.subr.mxu0 0.0
    %737 = vmatpush1.msra.mxu0 %v44
    %738 = vmatprep.subr.mxu0 0.0
    %739 = vmatpush1.msra.mxu0 0.0
    %740 = vmatprep.subr.mxu0 0.0
    %741 = vmatpush1.msra.mxu0 0.0
    %742 = vmatprep.subr.mxu0 0.0
    %743 = vmatpush1.msra.mxu0 0.0
    %744 = vmatprep.subr.mxu0 0.0
    %745 = vmatpush1.msra.mxu0 0.0
    %746 = vmatprep.subr.mxu0 0.0
    %747 = vmatpush1.msra.mxu0 0.0
    %748 = vmatprep.subr.mxu0 0.0
    %749 = vmatpush1.msra.mxu0 0.0
    %750 = vmatprep.subr.mxu0 0.0
    %751 = vmatpush1.msra.mxu0 0.0
    %752 = vmatprep.subr.mxu0 0.0
    %753 = vmatpush1.msra.mxu0 0.0
    %754 = vmatprep.subr.mxu0 0.0
    %755 = vmatpush1.msra.mxu0 0.0
    %756 = vmatprep.subr.mxu0 0.0
    %757 = vmatpush1.msra.mxu0 0.0
    %758 = vmatprep.subr.mxu0 0.0
    %759 = vmatpush1.msra.mxu0 0.0
    %760 = vmatprep.subr.mxu0 0.0
    %761 = vmatpush1.msra.mxu0 0.0
    %762 = vmatprep.subr.mxu0 0.0
    %763 = vmatpush1.msra.mxu0 0.0
    %764 = vmatprep.subr.mxu0 0.0
    %765 = vmatpush1.msra.mxu0 0.0
    %766 = vmatprep.subr.mxu0 0.0
    %767 = vmatpush1.msra.mxu0 0.0
    %768 = vmatprep.subr.mxu0 0.0
    %769 = vmatpush1.msra.mxu0 0.0
    %770 = vmatprep.subr.mxu0 0.0
    %771 = vmatpush1.msra.mxu0 0.0
    %772 = vmatprep.subr.mxu0 0.0
    %773 = vmatpush1.msra.mxu0 0.0
    %774 = vmatprep.subr.mxu0 0.0
    %775 = vmatpush1.msra.mxu0 0.0
    %776 = vmatprep.subr.mxu0 0.0
    %777 = vmatpush1.msra.mxu0 0.0
    %778 = vmatprep.subr.mxu0 0.0
    %779 = vmatpush1.msra.mxu0 0.0
    %780 = vmatprep.subr.mxu0 0.0
    %781 = vmatpush1.msra.mxu0 0.0
    %782 = vmatprep.subr.mxu0 0.0
    %783 = vmatpush1.msra.mxu0 0.0
    %784 = vmatprep.subr.mxu0 0.0
    %785 = vmatpush1.msra.mxu0 0.0
    %786 = vmatprep.subr.mxu0 0.0
    %787 = vmatpush1.msra.mxu0 0.0
    %788 = vmatprep.subr.mxu0 0.0
    %789 = vmatpush1.msra.mxu0 0.0
    %790 = vmatprep.subr.mxu0 0.0
    %791 = vmatpush1.msra.mxu0 0.0
    %792 = vmatprep.subr.mxu0 0.0
    %793 = vmatpush1.msra.mxu0 0.0
    %794 = vmatprep.mubr.f32.mxu0 0.0
    %795 = vmatmul.mubr.f32.gmra.mrb[0].mxu0 %v728
    %v796 = vpop.f32.mrb[0].mxu0
    %v797 = vadd.f32 0.0, %v796
    %v798 = vpop.f32.mrb[0].mxu0
    %799 = vdwg.mxu0
    %v800 = vadd.f32 %v727, %v797
    %v801 = vxor.u32 %v800, 2147483648
    %v802 = vmul.f32 %v801, 1.442695
    %v803 = vpow.pop %v802
    %v804 = vadd.f32 %v803, 1.0
    %v805 = vrcp.pop %v804
    %v806 = vmul.f32 1.0, %v805
    %v807 = vtanh.pop %v800
    %v808 = vmul.f32 %v806, %v713
    %810 = vrot.lane.b32.xlu0 %v807, 64
    %v811 = vpop.permute.xlu0 %810
    %v813 = vmul.f32 %v806, %v811
    %815 = vrot.lane.b32.xlu0 %v813, 32
    %v816 = vpop.permute.xlu0 %815
    %v818 = vadd.f32 %v808, %v816
    %v819 = vtanh.pop %v818
    %821 = vrot.lane.b32.xlu0 %v819, 64
    %v822 = vpop.permute.xlu0 %821
    %v824 = vmul.f32 %v806, %v822
    %826 = vrot.lane.b32.xlu0 %v824, 32
    %v827 = vpop.permute.xlu0 %826
    %s829 = scalar_lea.vmem [#allocation3], 8
    %830 = vst.msk [vmem:[%s829] sm:$0x3] %vm409, %v827
    %s831 = scalar_lea.vmem [#allocation2], 10
    %v832 = vld [vmem:[%s831] sm:$0x3]
    %v833 = vsel %vm60, %v827, 0
    %835 = vmatprep.subr.mxu0 0.0
    %836 = vmatpush1.msra.mxu0 %v41
    %837 = vmatprep.subr.mxu0 0.0
    %838 = vmatpush1.msra.mxu0 %v42
    %839 = vmatprep.subr.mxu0 0.0
    %840 = vmatpush1.msra.mxu0 %v43
    %841 = vmatprep.subr.mxu0 0.0
    %842 = vmatpush1.msra.mxu0 %v44
    %843 = vmatprep.subr.mxu0 0.0
    %844 = vmatpush1.msra.mxu0 0.0
    %845 = vmatprep.subr.mxu0 0.0
    %846 = vmatpush1.msra.mxu0 0.0
    %847 = vmatprep.subr.mxu0 0.0
    %848 = vmatpush1.msra.mxu0 0.0
    %849 = vmatprep.subr.mxu0 0.0
    %850 = vmatpush1.msra.mxu0 0.0
    %851 = vmatprep.subr.mxu0 0.0
    %852 = vmatpush1.msra.mxu0 0.0
    %853 = vmatprep.subr.mxu0 0.0
    %854 = vmatpush1.msra.mxu0 0.0
    %855 = vmatprep.subr.mxu0 0.0
    %856 = vmatpush1.msra.mxu0 0.0
    %857 = vmatprep.subr.mxu0 0.0
    %858 = vmatpush1.msra.mxu0 0.0
    %859 = vmatprep.subr.mxu0 0.0
    %860 = vmatpush1.msra.mxu0 0.0
    %861 = vmatprep.subr.mxu0 0.0
    %862 = vmatpush1.msra.mxu0 0.0
    %863 = vmatprep.subr.mxu0 0.0
    %864 = vmatpush1.msra.mxu0 0.0
    %865 = vmatprep.subr.mxu0 0.0
    %866 = vmatpush1.msra.mxu0 0.0
    %867 = vmatprep.subr.mxu0 0.0
    %868 = vmatpush1.msra.mxu0 0.0
    %869 = vmatprep.subr.mxu0 0.0
    %870 = vmatpush1.msra.mxu0 0.0
    %871 = vmatprep.subr.mxu0 0.0
    %872 = vmatpush1.msra.mxu0 0.0
    %873 = vmatprep.subr.mxu0 0.0
    %874 = vmatpush1.msra.mxu0 0.0
    %875 = vmatprep.subr.mxu0 0.0
    %876 = vmatpush1.msra.mxu0 0.0
    %877 = vmatprep.subr.mxu0 0.0
    %878 = vmatpush1.msra.mxu0 0.0
    %879 = vmatprep.subr.mxu0 0.0
    %880 = vmatpush1.msra.mxu0 0.0
    %881 = vmatprep.subr.mxu0 0.0
    %882 = vmatpush1.msra.mxu0 0.0
    %883 = vmatprep.subr.mxu0 0.0
    %884 = vmatpush1.msra.mxu0 0.0
    %885 = vmatprep.subr.mxu0 0.0
    %886 = vmatpush1.msra.mxu0 0.0
    %887 = vmatprep.subr.mxu0 0.0
    %888 = vmatpush1.msra.mxu0 0.0
    %889 = vmatprep.subr.mxu0 0.0
    %890 = vmatpush1.msra.mxu0 0.0
    %891 = vmatprep.subr.mxu0 0.0
    %892 = vmatpush1.msra.mxu0 0.0
    %893 = vmatprep.subr.mxu0 0.0
    %894 = vmatpush1.msra.mxu0 0.0
    %895 = vmatprep.subr.mxu0 0.0
    %896 = vmatpush1.msra.mxu0 0.0
    %897 = vmatprep.subr.mxu0 0.0
    %898 = vmatpush1.msra.mxu0 0.0
    %899 = vmatprep.mubr.f32.mxu0 0.0
    %900 = vmatmul.mubr.f32.gmra.mrb[0].mxu0 %v833
    %v901 = vpop.f32.mrb[0].mxu0
    %v902 = vadd.f32 0.0, %v901
    %v903 = vpop.f32.mrb[0].mxu0
    %904 = vdwg.mxu0
    %v905 = vadd.f32 %v832, %v902
    %v906 = vxor.u32 %v905, 2147483648
    %v907 = vmul.f32 %v906, 1.442695
    %v908 = vpow.pop %v907
    %v909 = vadd.f32 %v908, 1.0
    %v910 = vrcp.pop %v909
    %v911 = vmul.f32 1.0, %v910
    %v912 = vtanh.pop %v905
    %v913 = vmul.f32 %v911, %v818
    %915 = vrot.lane.b32.xlu0 %v912, 64
    %v916 = vpop.permute.xlu0 %915
    %v918 = vmul.f32 %v911, %v916
    %920 = vrot.lane.b32.xlu0 %v918, 32
    %v921 = vpop.permute.xlu0 %920
    %v923 = vadd.f32 %v913, %v921
    %v924 = vtanh.pop %v923
    %926 = vrot.lane.b32.xlu0 %v924, 64
    %v927 = vpop.permute.xlu0 %926
    %v929 = vmul.f32 %v911, %v927
    %931 = vrot.lane.b32.xlu0 %v929, 32
    %v932 = vpop.permute.xlu0 %931
    %s934 = scalar_lea.vmem [#allocation3], 10
    %935 = vst.msk [vmem:[%s934] sm:$0x3] %vm409, %v932
    %s936 = scalar_lea.vmem [#allocation2], 12
    %v937 = vld [vmem:[%s936] sm:$0x3]
    %v938 = vsel %vm60, %v932, 0
    %940 = vmatprep.subr.mxu0 0.0
    %941 = vmatpush1.msra.mxu0 %v41
    %942 = vmatprep.subr.mxu0 0.0
    %943 = vmatpush1.msra.mxu0 %v42
    %944 = vmatprep.subr.mxu0 0.0
    %945 = vmatpush1.msra.mxu0 %v43
    %946 = vmatprep.subr.mxu0 0.0
    %947 = vmatpush1.msra.mxu0 %v44
    %948 = vmatprep.subr.mxu0 0.0
    %949 = vmatpush1.msra.mxu0 0.0
    %950 = vmatprep.subr.mxu0 0.0
    %951 = vmatpush1.msra.mxu0 0.0
    %952 = vmatprep.subr.mxu0 0.0
    %953 = vmatpush1.msra.mxu0 0.0
    %954 = vmatprep.subr.mxu0 0.0
    %955 = vmatpush1.msra.mxu0 0.0
    %956 = vmatprep.subr.mxu0 0.0
    %957 = vmatpush1.msra.mxu0 0.0
    %958 = vmatprep.subr.mxu0 0.0
    %959 = vmatpush1.msra.mxu0 0.0
    %960 = vmatprep.subr.mxu0 0.0
    %961 = vmatpush1.msra.mxu0 0.0
    %962 = vmatprep.subr.mxu0 0.0
    %963 = vmatpush1.msra.mxu0 0.0
    %964 = vmatprep.subr.mxu0 0.0
    %965 = vmatpush1.msra.mxu0 0.0
    %966 = vmatprep.subr.mxu0 0.0
    %967 = vmatpush1.msra.mxu0 0.0
    %968 = vmatprep.subr.mxu0 0.0
    %969 = vmatpush1.msra.mxu0 0.0
    %970 = vmatprep.subr.mxu0 0.0
    %971 = vmatpush1.msra.mxu0 0.0
    %972 = vmatprep.subr.mxu0 0.0
    %973 = vmatpush1.msra.mxu0 0.0
    %974 = vmatprep.subr.mxu0 0.0
    %975 = vmatpush1.msra.mxu0 0.0
    %976 = vmatprep.subr.mxu0 0.0
    %977 = vmatpush1.msra.mxu0 0.0
    %978 = vmatprep.subr.mxu0 0.0
    %979 = vmatpush1.msra.mxu0 0.0
    %980 = vmatprep.subr.mxu0 0.0
    %981 = vmatpush1.msra.mxu0 0.0
    %982 = vmatprep.subr.mxu0 0.0
    %983 = vmatpush1.msra.mxu0 0.0
    %984 = vmatprep.subr.mxu0 0.0
    %985 = vmatpush1.msra.mxu0 0.0
    %986 = vmatprep.subr.mxu0 0.0
    %987 = vmatpush1.msra.mxu0 0.0
    %988 = vmatprep.subr.mxu0 0.0
    %989 = vmatpush1.msra.mxu0 0.0
    %990 = vmatprep.subr.mxu0 0.0
    %991 = vmatpush1.msra.mxu0 0.0
    %992 = vmatprep.subr.mxu0 0.0
    %993 = vmatpush1.msra.mxu0 0.0
    %994 = vmatprep.subr.mxu0 0.0
    %995 = vmatpush1.msra.mxu0 0.0
    %996 = vmatprep.subr.mxu0 0.0
    %997 = vmatpush1.msra.mxu0 0.0
    %998 = vmatprep.subr.mxu0 0.0
    %999 = vmatpush1.msra.mxu0 0.0
    %1000 = vmatprep.subr.mxu0 0.0
    %1001 = vmatpush1.msra.mxu0 0.0
    %1002 = vmatprep.subr.mxu0 0.0
    %1003 = vmatpush1.msra.mxu0 0.0
    %1004 = vmatprep.mubr.f32.mxu0 0.0
    %1005 = vmatmul.mubr.f32.gmra.mrb[0].mxu0 %v938
    %v1006 = vpop.f32.mrb[0].mxu0
    %v1007 = vadd.f32 0.0, %v1006
    %v1008 = vpop.f32.mrb[0].mxu0
    %1009 = vdwg.mxu0
    %v1010 = vadd.f32 %v937, %v1007
    %v1011 = vxor.u32 %v1010, 2147483648
    %v1012 = vmul.f32 %v1011, 1.442695
    %v1013 = vpow.pop %v1012
    %v1014 = vadd.f32 %v1013, 1.0
    %v1015 = vrcp.pop %v1014
    %v1016 = vmul.f32 1.0, %v1015
    %v1017 = vtanh.pop %v1010
    %v1018 = vmul.f32 %v1016, %v923
    %1020 = vrot.lane.b32.xlu0 %v1017, 64
    %v1021 = vpop.permute.xlu0 %1020
    %v1023 = vmul.f32 %v1016, %v1021
    %1025 = vrot.lane.b32.xlu0 %v1023, 32
    %v1026 = vpop.permute.xlu0 %1025
    %v1028 = vadd.f32 %v1018, %v1026
    %v1029 = vtanh.pop %v1028
    %1031 = vrot.lane.b32.xlu0 %v1029, 64
    %v1032 = vpop.permute.xlu0 %1031
    %v1034 = vmul.f32 %v1016, %v1032
    %1036 = vrot.lane.b32.xlu0 %v1034, 32
    %v1037 = vpop.permute.xlu0 %1036
    %s1039 = scalar_lea.vmem [#allocation3], 12
    %1040 = vst.msk [vmem:[%s1039] sm:$0x3] %vm409, %v1037
    %s1041 = scalar_lea.vmem [#allocation2], 14
    %v1042 = vld [vmem:[%s1041] sm:$0x3]
    %v1043 = vsel %vm60, %v1037, 0
    %1045 = vmatprep.subr.mxu0 0.0
    %1046 = vmatpush1.msra.mxu0 %v41
    %1047 = vmatprep.subr.mxu0 0.0
    %1048 = vmatpush1.msra.mxu0 %v42
    %1049 = vmatprep.subr.mxu0 0.0
    %1050 = vmatpush1.msra.mxu0 %v43
    %1051 = vmatprep.subr.mxu0 0.0
    %1052 = vmatpush1.msra.mxu0 %v44
    %1053 = vmatprep.subr.mxu0 0.0
    %1054 = vmatpush1.msra.mxu0 0.0
    %1055 = vmatprep.subr.mxu0 0.0
    %1056 = vmatpush1.msra.mxu0 0.0
    %1057 = vmatprep.subr.mxu0 0.0
    %1058 = vmatpush1.msra.mxu0 0.0
    %1059 = vmatprep.subr.mxu0 0.0
    %1060 = vmatpush1.msra.mxu0 0.0
    %1061 = vmatprep.subr.mxu0 0.0
    %1062 = vmatpush1.msra.mxu0 0.0
    %1063 = vmatprep.subr.mxu0 0.0
    %1064 = vmatpush1.msra.mxu0 0.0
    %1065 = vmatprep.subr.mxu0 0.0
    %1066 = vmatpush1.msra.mxu0 0.0
    %1067 = vmatprep.subr.mxu0 0.0
    %1068 = vmatpush1.msra.mxu0 0.0
    %1069 = vmatprep.subr.mxu0 0.0
    %1070 = vmatpush1.msra.mxu0 0.0
    %1071 = vmatprep.subr.mxu0 0.0
    %1072 = vmatpush1.msra.mxu0 0.0
    %1073 = vmatprep.subr.mxu0 0.0
    %1074 = vmatpush1.msra.mxu0 0.0
    %1075 = vmatprep.subr.mxu0 0.0
    %1076 = vmatpush1.msra.mxu0 0.0
    %1077 = vmatprep.subr.mxu0 0.0
    %1078 = vmatpush1.msra.mxu0 0.0
    %1079 = vmatprep.subr.mxu0 0.0
    %1080 = vmatpush1.msra.mxu0 0.0
    %1081 = vmatprep.subr.mxu0 0.0
    %1082 = vmatpush1.msra.mxu0 0.0
    %1083 = vmatprep.subr.mxu0 0.0
    %1084 = vmatpush1.msra.mxu0 0.0
    %1085 = vmatprep.subr.mxu0 0.0
    %1086 = vmatpush1.msra.mxu0 0.0
    %1087 = vmatprep.subr.mxu0 0.0
    %1088 = vmatpush1.msra.mxu0 0.0
    %1089 = vmatprep.subr.mxu0 0.0
    %1090 = vmatpush1.msra.mxu0 0.0
    %1091 = vmatprep.subr.mxu0 0.0
    %1092 = vmatpush1.msra.mxu0 0.0
    %1093 = vmatprep.subr.mxu0 0.0
    %1094 = vmatpush1.msra.mxu0 0.0
    %1095 = vmatprep.subr.mxu0 0.0
    %1096 = vmatpush1.msra.mxu0 0.0
    %1097 = vmatprep.subr.mxu0 0.0
    %1098 = vmatpush1.msra.mxu0 0.0
    %1099 = vmatprep.subr.mxu0 0.0
    %1100 = vmatpush1.msra.mxu0 0.0
    %1101 = vmatprep.subr.mxu0 0.0
    %1102 = vmatpush1.msra.mxu0 0.0
    %1103 = vmatprep.subr.mxu0 0.0
    %1104 = vmatpush1.msra.mxu0 0.0
    %1105 = vmatprep.subr.mxu0 0.0
    %1106 = vmatpush1.msra.mxu0 0.0
    %1107 = vmatprep.subr.mxu0 0.0
    %1108 = vmatpush1.msra.mxu0 0.0
    %1109 = vmatprep.mubr.f32.mxu0 0.0
    %1110 = vmatmul.mubr.f32.gmra.mrb[0].mxu0 %v1043
    %v1111 = vpop.f32.mrb[0].mxu0
    %v1112 = vadd.f32 0.0, %v1111
    %v1113 = vpop.f32.mrb[0].mxu0
    %1114 = vdwg.mxu0
    %v1115 = vadd.f32 %v1042, %v1112
    %v1116 = vxor.u32 %v1115, 2147483648
    %v1117 = vmul.f32 %v1116, 1.442695
    %v1118 = vpow.pop %v1117
    %v1119 = vadd.f32 %v1118, 1.0
    %v1120 = vrcp.pop %v1119
    %v1121 = vmul.f32 1.0, %v1120
    %v1122 = vtanh.pop %v1115
    %v1123 = vmul.f32 %v1121, %v1028
    %1125 = vrot.lane.b32.xlu0 %v1122, 64
    %v1126 = vpop.permute.xlu0 %1125
    %v1128 = vmul.f32 %v1121, %v1126
    %1130 = vrot.lane.b32.xlu0 %v1128, 32
    %v1131 = vpop.permute.xlu0 %1130
    %v1133 = vadd.f32 %v1123, %v1131
    %v1134 = vtanh.pop %v1133
    %1136 = vrot.lane.b32.xlu0 %v1134, 64
    %v1137 = vpop.permute.xlu0 %1136
    %v1139 = vmul.f32 %v1121, %v1137
    %1141 = vrot.lane.b32.xlu0 %v1139, 32
    %v1142 = vpop.permute.xlu0 %1141
    %s1144 = scalar_lea.vmem [#allocation3], 14
    %1145 = vst.msk [vmem:[%s1144] sm:$0x3] %vm409, %v1142
    %v1146 = vld [vmem:[#allocation3] sm:$0x3]
    %v1147 = vld [vmem:[#allocation3 + $0x2] sm:$0x3]
    %v1148 = vld [vmem:[#allocation3 + $0x4] sm:$0x3]
    %v1149 = vld [vmem:[#allocation3 + $0x6] sm:$0x3]
    %v1150 = vld [vmem:[#allocation3 + $0x8] sm:$0x3]
    %v1151 = vld [vmem:[#allocation3 + $0xa] sm:$0x3]
    %v1152 = vld [vmem:[#allocation3 + $0xc] sm:$0x3]
    %v1153 = vld [vmem:[#allocation3 + $0xe] sm:$0x3]
    %v1154 = vcombine.low %v1146, %v1148
    %v1156 = vunpack.c.l.s4 1983009808
    %v1157 = vunpack.c.0.s8 %v1156
    %v1158 = vlaneseq
    %v1159 = vshrl.u32 %v1158, 7
    %v1160 = vsub.s32 %v1157, %v1159
    %v1161 = vrot.slane %v1154, %v1160
    %v1162 = vcombine.low %v1147, %v1149
    %v1164 = vunpack.c.l.s4 1983009808
    %v1165 = vunpack.c.0.s8 %v1164
    %v1166 = vlaneseq
    %v1167 = vshrl.u32 %v1166, 7
    %v1168 = vsub.s32 %v1165, %v1167
    %v1169 = vrot.slane %v1162, %v1168
    %v1170 = vcombine.low %v1150, %v1152
    %v1172 = vunpack.c.l.s4 1983009808
    %v1173 = vunpack.c.0.s8 %v1172
    %v1174 = vlaneseq
    %v1175 = vshrl.u32 %v1174, 7
    %v1176 = vsub.s32 %v1173, %v1175
    %v1177 = vrot.slane %v1170, %v1176
    %v1178 = vcombine.low %v1151, %v1153
    %v1180 = vunpack.c.l.s4 1983009808
    %v1181 = vunpack.c.0.s8 %v1180
    %v1182 = vlaneseq
    %v1183 = vshrl.u32 %v1182, 7
    %v1184 = vsub.s32 %v1181, %v1183
    %v1185 = vrot.slane %v1178, %v1184
    %v1186 = vcombine.low %v1161, %v1169
    %v1188 = vunpack.c.l.s4 1934713408
    %v1189 = vunpack.c.0.s8 %v1188
    %v1190 = vlaneseq
    %v1191 = vshrl.u32 %v1190, 7
    %v1192 = vsub.s32 %v1189, %v1191
    %v1193 = vrot.slane %v1186, %v1192
    %v1194 = vcombine.low %v1177, %v1185
    %v1196 = vunpack.c.l.s4 1934713408
    %v1197 = vunpack.c.0.s8 %v1196
    %v1198 = vlaneseq
    %v1199 = vshrl.u32 %v1198, 7
    %v1200 = vsub.s32 %v1197, %v1199
    %v1201 = vrot.slane %v1194, %v1200
    %v1202 = vcombine.low %v1193, %v1201
    %v1203 = vcombine.high %v1193, %v1201
    %v1205 = vlaneseq
    %v1206 = vshrl.u32 %v1205, 7
    %v1207 = vsub.s32 0, %v1206
    %v1208 = vrot.slane %v51, %v1207
    %v1211 = vsel %vm60, %v1202, 0
    %v1214 = vsel %vm60, %v1203, 0
    %1216 = vmatprep.subr.mxu0 0.0
    %1217 = vmatpush1.msra.mxu0 %v45
    %1218 = vmatprep.subr.mxu0 0.0
    %1219 = vmatpush1.msra.mxu0 %v46
    %1220 = vmatprep.subr.mxu0 0.0
    %1221 = vmatpush1.msra.mxu0 %v47
    %1222 = vmatprep.subr.mxu0 0.0
    %1223 = vmatpush1.msra.mxu0 %v48
    %1224 = vmatprep.subr.mxu0 0.0
    %1225 = vmatpush1.msra.mxu0 0.0
    %1226 = vmatprep.subr.mxu0 0.0
    %1227 = vmatpush1.msra.mxu0 0.0
    %1228 = vmatprep.subr.mxu0 0.0
    %1229 = vmatpush1.msra.mxu0 0.0
    %1230 = vmatprep.subr.mxu0 0.0
    %1231 = vmatpush1.msra.mxu0 0.0
    %1232 = vmatprep.subr.mxu0 0.0
    %1233 = vmatpush1.msra.mxu0 0.0
    %1234 = vmatprep.subr.mxu0 0.0
    %1235 = vmatpush1.msra.mxu0 0.0
    %1236 = vmatprep.subr.mxu0 0.0
    %1237 = vmatpush1.msra.mxu0 0.0
    %1238 = vmatprep.subr.mxu0 0.0
    %1239 = vmatpush1.msra.mxu0 0.0
    %1240 = vmatprep.subr.mxu0 0.0
    %1241 = vmatpush1.msra.mxu0 0.0
    %1242 = vmatprep.subr.mxu0 0.0
    %1243 = vmatpush1.msra.mxu0 0.0
    %1244 = vmatprep.subr.mxu0 0.0
    %1245 = vmatpush1.msra.mxu0 0.0
    %1246 = vmatprep.subr.mxu0 0.0
    %1247 = vmatpush1.msra.mxu0 0.0
    %1248 = vmatprep.subr.mxu0 0.0
    %1249 = vmatpush1.msra.mxu0 0.0
    %1250 = vmatprep.subr.mxu0 0.0
    %1251 = vmatpush1.msra.mxu0 0.0
    %1252 = vmatprep.subr.mxu0 0.0
    %1253 = vmatpush1.msra.mxu0 0.0
    %1254 = vmatprep.subr.mxu0 0.0
    %1255 = vmatpush1.msra.mxu0 0.0
    %1256 = vmatprep.subr.mxu0 0.0
    %1257 = vmatpush1.msra.mxu0 0.0
    %1258 = vmatprep.subr.mxu0 0.0
    %1259 = vmatpush1.msra.mxu0 0.0
    %1260 = vmatprep.subr.mxu0 0.0
    %1261 = vmatpush1.msra.mxu0 0.0
    %1262 = vmatprep.subr.mxu0 0.0
    %1263 = vmatpush1.msra.mxu0 0.0
    %1264 = vmatprep.subr.mxu0 0.0
    %1265 = vmatpush1.msra.mxu0 0.0
    %1266 = vmatprep.subr.mxu0 0.0
    %1267 = vmatpush1.msra.mxu0 0.0
    %1268 = vmatprep.subr.mxu0 0.0
    %1269 = vmatpush1.msra.mxu0 0.0
    %1270 = vmatprep.subr.mxu0 0.0
    %1271 = vmatpush1.msra.mxu0 0.0
    %1272 = vmatprep.subr.mxu0 0.0
    %1273 = vmatpush1.msra.mxu0 0.0
    %1274 = vmatprep.subr.mxu0 0.0
    %1275 = vmatpush1.msra.mxu0 0.0
    %1276 = vmatprep.subr.mxu0 0.0
    %1277 = vmatpush1.msra.mxu0 0.0
    %1278 = vmatprep.subr.mxu0 0.0
    %1279 = vmatpush1.msra.mxu0 0.0
    %1280 = vmatprep.mubr.f32.mxu0 0.0
    %1281 = vmatmul.mubr.f32.gmra.mrb[0].mxu0 %v1211
    %v1282 = vpop.f32.mrb[0].mxu0
    %v1283 = vadd.f32 %v1208, %v1282
    %v1284 = vpop.f32.mrb[0].mxu0
    %1285 = vmatprep.mubr.f32.mxu0 0.0
    %1286 = vmatmul.mubr.f32.gmra.mrb[0].mxu0 %v1214
    %v1287 = vpop.f32.mrb[0].mxu0
    %v1288 = vadd.f32 %v1208, %v1287
    %v1289 = vpop.f32.mrb[0].mxu0
    %1290 = vdwg.mxu0
    %vm1291 = vcmask 130048
    %1292 = vst.msk [vmem:[%s4] sm:$0xff] %vm1291, %v1283
    %1293 = vst.msk [vmem:[%s4 + $0x8] sm:$0xff] %vm1291, %v1288
    %v1294 = vsel %vm60, %v1142, %v1133
    %vm1295 = vcmask 517120
    %1296 = vst.msk [vmem:[%s5] sm:$0x3] %vm1295, %v1294
    // Predicated region
    $region22: #{rllib_policy_forward.1} parent=1 // pred_check
      _
    $region23: #{rllib_policy_forward.1} parent=1 // pred_check_branch
      %1298 = sbr.rel (0) target = $region25
    $region24: #{rllib_policy_forward.1} parent=1 // pred_region
      _
    $region25: #{rllib_policy_forward.1} parent=1 // pred_fallthru
      _
    // Predicated region
    $region26: #{rllib_policy_forward.1} parent=1 // pred_check
      _
    $region27: #{rllib_policy_forward.1} parent=1 // pred_check_branch
      %1300 = sbr.rel (0) target = $region29
    $region28: #{rllib_policy_forward.1} parent=1 // pred_region
      _
    $region29: #{rllib_policy_forward.1} parent=1 // pred_fallthru
      _
    // Predicated region
    $region30: #{rllib_policy_forward.1} parent=1 // pred_check
      _
    $region31: #{rllib_policy_forward.1} parent=1 // pred_check_branch
      %1302 = sbr.rel (0) target = $region33
    $region32: #{rllib_policy_forward.1} parent=1 // pred_region
      _
    $region33: #{rllib_policy_forward.1} parent=1 // pred_fallthru
      _
    // Predicated region
    $region34: #{rllib_policy_forward.1} parent=1 // pred_check
      _
    $region35: #{rllib_policy_forward.1} parent=1 // pred_check_branch
      %1304 = sbr.rel (0) target = $region37
    $region36: #{rllib_policy_forward.1} parent=1 // pred_region
      _
    $region37: #{rllib_policy_forward.1} parent=1 // pred_fallthru
      _
    %1305 = vsyncpa [#allocation5], 1

</llo_original>
